<compile_context>
chip_gen: v7x
topology: tpu7x:2x2x1
jax: 0.10.0
libtpu: 0.0.40
codegen_flags: <defaults>
</compile_context>

<pallas_src>
import functools

import jax
import jax.numpy as jnp
from jax.experimental import pallas as pl
from jax.experimental.pallas import tpu as pltpu


def _phi(x):
    # phi(x) = elu(x) + 1  ->  x + 1 for x > 0, exp(x) otherwise.
    # Clamp exp's argument so the EUP never evaluates exp of large positives.
    return jnp.where(x > 0, x + 1.0, jnp.exp(jnp.minimum(x, 0.0)))


def _round_up(x, m):
    return ((x + m - 1) // m) * m


def _linear_attn_kernel(q_in, k_in, v_in,
                        wq, bq, wk, bk, wv, bv, wo, bo,
                        tril, seg,
                        o_ref,
                        kv_carry, k_carry,
                        *, ts):
    s = pl.program_id(1)

    # Reset the per-batch running sums at the start of every sequence sweep.
    @pl.when(s == 0)
    def _():
        kv_carry[...] = jnp.zeros_like(kv_carry)
        k_carry[...] = jnp.zeros_like(k_carry)

    xq = q_in[0]        # (TS, Hp) bf16
    xk = k_in[0]
    xv = v_in[0]

    # QKV projections: bf16 MXU, f32 accumulation, biases added in f32.
    q = jnp.dot(xq, wq[...], preferred_element_type=jnp.float32) + bq[...]
    k = jnp.dot(xk, wk[...], preferred_element_type=jnp.float32) + bk[...]
    v = jnp.dot(xv, wv[...], preferred_element_type=jnp.float32) + bv[...]

    q_phi = _phi(q)                       # (TS, Dp) f32
    k_phi = _phi(k)

    kv = (k_phi * v).astype(jnp.bfloat16)
    k_phi_b = k_phi.astype(jnp.bfloat16)

    # Causal cumulative sums: in-tile inclusive cumsum via a small (TS, TS)
    # lower-triangular matmul plus the carry from previous sequence tiles.
    kv_cum = jnp.dot(tril[...], kv, preferred_element_type=jnp.float32) + kv_carry[...]
    k_cum = jnp.dot(tril[...], k_phi_b, preferred_element_type=jnp.float32) + k_carry[...]

    # Last row of the inclusive cumsum = new carry (tril's last row is all 1s).
    kv_carry[...] = kv_cum[ts - 1:ts, :]
    k_carry[...] = k_cum[ts - 1:ts, :]

    numerator = q_phi * kv_cum            # (TS, Dp)
    qk = q_phi * k_cum                    # (TS, Dp)

    # Per-head denominator as one matmul against a block-diagonal 0/1 mask
    # (padded lanes zeroed), then approx reciprocal on the EUP.
    denom = jnp.dot(qk.astype(jnp.bfloat16), seg[...],
                    preferred_element_type=jnp.float32)
    out = numerator * pl.reciprocal(denom + 1e-6, approx=True)

    # Output projection.
    y = jnp.dot(out.astype(jnp.bfloat16), wo[...],
                preferred_element_type=jnp.float32) + bo[...]
    o_ref[0] = y.astype(o_ref.dtype)


def linear_attention_pallas(query, key, value, params, *, n_heads, head_dim,
                            block_seq=256):
    """query/key/value: (B, S, h_dim). params: dict of pre-transposed weights."""
    B, S, H = query.shape
    D = n_heads * head_dim

    # Lane-dense layout: pad feature dims to multiples of 128.
    Hp = _round_up(H, 128)
    Dp = _round_up(D, 128)
    TS = min(_round_up(block_seq, 8), _round_up(S, 8))
    Sp = _round_up(S, TS)
    n_seq = Sp // TS

    bf16, f32 = jnp.bfloat16, jnp.float32

    def pad_x(x):
        return jnp.pad(x, ((0, 0), (0, Sp - S), (0, Hp - H))).astype(bf16)

    qx, kx, vx = pad_x(query), pad_x(key), pad_x(value)

    def pad_w(w, r, c):
        return jnp.pad(w, ((0, r - w.shape[0]), (0, c - w.shape[1])))

    wq = pad_w(params["wq"], Hp, Dp).astype(bf16)
    wk = pad_w(params["wk"], Hp, Dp).astype(bf16)
    wv = pad_w(params["wv"], Hp, Dp).astype(bf16)
    wo = pad_w(params["wo"], Dp, Hp).astype(bf16)
    bq = pad_w(params["bq"], 1, Dp).astype(f32)
    bk = pad_w(params["bk"], 1, Dp).astype(f32)
    bv = pad_w(params["bv"], 1, Dp).astype(f32)
    bo = pad_w(params["bo"], 1, Hp).astype(f32)

    # Hoisted constant masks (built once in the wrapper, not per grid step).
    r = jnp.arange(TS)
    tril = (r[:, None] >= r[None, :]).astype(bf16)              # (TS, TS)
    lane = jnp.arange(Dp)
    hid = lane // head_dim
    valid = lane < D
    seg = ((hid[:, None] == hid[None, :])
           & valid[:, None] & valid[None, :]).astype(bf16)      # (Dp, Dp)

    kernel = functools.partial(_linear_attn_kernel, ts=TS)

    inp_spec = pl.BlockSpec((1, TS, Hp), lambda b, s: (b, s, 0))
    w_hd = pl.BlockSpec((Hp, Dp), lambda b, s: (0, 0))
    b_d = pl.BlockSpec((1, Dp), lambda b, s: (0, 0))
    w_dh = pl.BlockSpec((Dp, Hp), lambda b, s: (0, 0))
    b_h = pl.BlockSpec((1, Hp), lambda b, s: (0, 0))
    tril_spec = pl.BlockSpec((TS, TS), lambda b, s: (0, 0))
    seg_spec = pl.BlockSpec((Dp, Dp), lambda b, s: (0, 0))

    flops_per_tile = 2 * TS * (3 * Hp * Dp + 2 * TS * Dp + Dp * Dp + Dp * Hp)
    cost = pl.CostEstimate(
        flops=int(B * n_seq * flops_per_tile),
        transcendentals=int(2 * B * Sp * Dp),
        bytes_accessed=int(3 * B * Sp * Hp * 2 + B * Sp * Hp * 4
                           + 4 * Hp * Dp * 2 + 2 * (Dp + Hp) * 4
                           + TS * TS * 2 + Dp * Dp * 2),
    )

    out = pl.pallas_call(
        kernel,
        out_shape=jax.ShapeDtypeStruct((B, Sp, Hp), jnp.float32),
        grid_spec=pltpu.PrefetchScalarGridSpec(
            num_scalar_prefetch=0,
            grid=(B, n_seq),
            in_specs=[
                inp_spec, inp_spec, inp_spec,
                w_hd, b_d,    # Q
                w_hd, b_d,    # K
                w_hd, b_d,    # V
                w_dh, b_h,    # O
                tril_spec, seg_spec,
            ],
            out_specs=pl.BlockSpec((1, TS, Hp), lambda b, s: (b, s, 0)),
            scratch_shapes=[pltpu.VMEM((1, Dp), jnp.float32),   # cumsum(phi(k)*v) carry
                            pltpu.VMEM((1, Dp), jnp.float32)],  # cumsum(phi(k)) carry
        ),
        compiler_params=pltpu.CompilerParams(
            dimension_semantics=("parallel", "arbitrary"),
            vmem_limit_bytes=32 * 1024 * 1024),
        cost_estimate=cost,
    )(qx, kx, vx, wq, bq, wk, bk, wv, bv, wo, bo, tril, seg)

    return out[:, :S, :H]


def linear_attention_ref(query, key, value, params, *, n_heads, head_dim):
    """Pure-JAX f32 reference mirroring the PyTorch forward exactly."""
    B, S, H = query.shape
    q = query @ params["wq"] + params["bq"][0]
    k = key @ params["wk"] + params["bk"][0]
    v = value @ params["wv"] + params["bv"][0]
    q = q.reshape(B, S, n_heads, head_dim).transpose(0, 2, 1, 3)
    k = k.reshape(B, S, n_heads, head_dim).transpose(0, 2, 1, 3)
    v = v.reshape(B, S, n_heads, head_dim).transpose(0, 2, 1, 3)
    q_phi = _phi(q)
    k_phi = _phi(k)
    # einsum('bhid,bhidd->bhid', q_phi, cumsum(kv)) takes the diagonal of the
    # (d,d) outer product -> elementwise cumsum(k_phi * v).
    kv_diag_cumsum = jnp.cumsum(k_phi * v, axis=2)
    k_phi_cumsum = jnp.cumsum(k_phi, axis=2)
    out_num = q_phi * kv_diag_cumsum
    out_den = jnp.sum(q_phi * k_phi_cumsum, axis=-1, keepdims=True)
    out = out_num / (out_den + 1e-6)
    out = out.transpose(0, 2, 1, 3).reshape(B, S, n_heads * head_dim)
    return out @ params["wo"] + params["bo"][0]


def init_params(key, h_dim, n_heads, head_dim):
    D = n_heads * head_dim
    ks = jax.random.split(key, 4)
    # PyTorch nn.Linear weight is (out, in) with normal(0, 0.02); we store the
    # transpose (in, out) so the kernel computes x @ W + b. Biases are zero.
    return {
        "wq": 0.02 * jax.random.normal(ks[0], (h_dim, D), jnp.float32),
        "bq": jnp.zeros((1, D), jnp.float32),
        "wk": 0.02 * jax.random.normal(ks[1], (h_dim, D), jnp.float32),
        "bk": jnp.zeros((1, D), jnp.float32),
        "wv": 0.02 * jax.random.normal(ks[2], (h_dim, D), jnp.float32),
        "bv": jnp.zeros((1, D), jnp.float32),
        "wo": 0.02 * jax.random.normal(ks[3], (D, h_dim), jnp.float32),
        "bo": jnp.zeros((1, h_dim), jnp.float32),
    }


if __name__ == "__main__":
    B, S, H = 2, 16, 32
    n_heads, head_dim = 2, 16

    root = jax.random.PRNGKey(0)
    kq, kk, kv, kp = jax.random.split(root, 4)
    query = jax.random.normal(kq, (B, S, H), jnp.float32)
    key_in = jax.random.normal(kk, (B, S, H), jnp.float32)
    value = jax.random.normal(kv, (B, S, H), jnp.float32)
    params = init_params(kp, H, n_heads, head_dim)

    # block_seq=8 so this small test exercises the multi-tile carry scan
    # (two sequence tiles per batch element).
    out = linear_attention_pallas(query, key_in, value, params,
                                  n_heads=n_heads, head_dim=head_dim,
                                  block_seq=8)
    out = jax.block_until_ready(out)

    ref = linear_attention_ref(query, key_in, value, params,
                               n_heads=n_heads, head_dim=head_dim)
    assert out.shape == (B, S, H)
    max_err = float(jnp.max(jnp.abs(out - ref)))
    # bf16 MXU inputs with f32 accumulation -> tolerance loosened vs pure f32.
    assert jnp.allclose(out, ref, rtol=5e-2, atol=2e-3), \
        f"mismatch vs reference (max abs err={max_err})"

    print("KERNEL_OK")
</pallas_src>

<mosaic_0001>
module attributes {stable_mosaic.version = 11 : i64} {
  func.func @_linear_attn_kernel(%arg0: i32, %arg1: i32, %arg2: memref<1x8x128xbf16, #tpu.memory_space<vmem>>, %arg3: memref<1x8x128xbf16, #tpu.memory_space<vmem>>, %arg4: memref<1x8x128xbf16, #tpu.memory_space<vmem>>, %arg5: memref<128x128xbf16, #tpu.memory_space<vmem>>, %arg6: memref<1x128xf32, #tpu.memory_space<vmem>>, %arg7: memref<128x128xbf16, #tpu.memory_space<vmem>>, %arg8: memref<1x128xf32, #tpu.memory_space<vmem>>, %arg9: memref<128x128xbf16, #tpu.memory_space<vmem>>, %arg10: memref<1x128xf32, #tpu.memory_space<vmem>>, %arg11: memref<128x128xbf16, #tpu.memory_space<vmem>>, %arg12: memref<1x128xf32, #tpu.memory_space<vmem>>, %arg13: memref<8x8xbf16, #tpu.memory_space<vmem>>, %arg14: memref<128x128xbf16, #tpu.memory_space<vmem>>, %arg15: memref<1x8x128xf32, #tpu.memory_space<vmem>>, %arg16: memref<1x128xf32, #tpu.memory_space<vmem>>, %arg17: memref<1x128xf32, #tpu.memory_space<vmem>>) attributes {dimension_semantics = [#tpu.dimension_semantics<parallel>, #tpu.dimension_semantics<arbitrary>], iteration_bounds = array<i64: 2, 2>, scalar_prefetch = 0 : i64, scratch_operands = 2 : i64, tpu.core_type = #tpu.core_type<tc>, window_params = [{transform_indices = @transform_0, window_bounds = array<i64: 1, 8, 128>}, {transform_indices = @transform_1, window_bounds = array<i64: 1, 8, 128>}, {transform_indices = @transform_2, window_bounds = array<i64: 1, 8, 128>}, {pipeline_mode = #tpu.pipeline_mode<synchronous>, transform_indices = @transform_3, window_bounds = array<i64: 128, 128>}, {pipeline_mode = #tpu.pipeline_mode<synchronous>, transform_indices = @transform_4, window_bounds = array<i64: 1, 128>}, {pipeline_mode = #tpu.pipeline_mode<synchronous>, transform_indices = @transform_5, window_bounds = array<i64: 128, 128>}, {pipeline_mode = #tpu.pipeline_mode<synchronous>, transform_indices = @transform_6, window_bounds = array<i64: 1, 128>}, {pipeline_mode = #tpu.pipeline_mode<synchronous>, transform_indices = @transform_7, window_bounds = array<i64: 128, 128>}, {pipeline_mode = #tpu.pipeline_mode<synchronous>, transform_indices = @transform_8, window_bounds = array<i64: 1, 128>}, {pipeline_mode = #tpu.pipeline_mode<synchronous>, transform_indices = @transform_9, window_bounds = array<i64: 128, 128>}, {pipeline_mode = #tpu.pipeline_mode<synchronous>, transform_indices = @transform_10, window_bounds = array<i64: 1, 128>}, {pipeline_mode = #tpu.pipeline_mode<synchronous>, transform_indices = @transform_11, window_bounds = array<i64: 8, 8>}, {pipeline_mode = #tpu.pipeline_mode<synchronous>, transform_indices = @transform_12, window_bounds = array<i64: 128, 128>}, {transform_indices = @transform_13, window_bounds = array<i64: 1, 8, 128>}]} {
    %c0_i32 = arith.constant 0 : i32
    %0 = arith.cmpi eq, %arg1, %c0_i32 : i32
    %1 = arith.extui %0 : i1 to i32
    %c0_i32_0 = arith.constant 0 : i32
    %2 = arith.cmpi ne, %1, %c0_i32_0 : i32
    scf.if %2 {
      %cst_55 = arith.constant 0.000000e+00 : f32
      %75 = vector.broadcast %cst_55 : f32 to vector<1x128xf32>
      %c0_56 = arith.constant 0 : index
      %c0_57 = arith.constant 0 : index
      %76 = vector.load %arg16[%c0_56, %c0_57] : memref<1x128xf32, #tpu.memory_space<vmem>>, vector<1x128xf32>
      tpu.vector_store %arg16[%c0_56, %c0_57], %75 {strides = array<i32>} : memref<1x128xf32, #tpu.memory_space<vmem>>, vector<1x128xf32>,
      %cst_58 = arith.constant 0.000000e+00 : f32
      %77 = vector.broadcast %cst_58 : f32 to vector<1x128xf32>
      %c0_59 = arith.constant 0 : index
      %c0_60 = arith.constant 0 : index
      %78 = vector.load %arg17[%c0_59, %c0_60] : memref<1x128xf32, #tpu.memory_space<vmem>>, vector<1x128xf32>
      tpu.vector_store %arg17[%c0_59, %c0_60], %77 {strides = array<i32>} : memref<1x128xf32, #tpu.memory_space<vmem>>, vector<1x128xf32>,
    } else {
    }
    %c0 = arith.constant 0 : index
    %c0_1 = arith.constant 0 : index
    %c0_2 = arith.constant 0 : index
    %3 = vector.load %arg2[%c0, %c0_1, %c0_2] : memref<1x8x128xbf16, #tpu.memory_space<vmem>>, vector<1x8x128xbf16>
    %4 = vector.shape_cast %3 : vector<1x8x128xbf16> to vector<8x128xbf16>
    %c0_3 = arith.constant 0 : index
    %c0_4 = arith.constant 0 : index
    %c0_5 = arith.constant 0 : index
    %5 = vector.load %arg3[%c0_3, %c0_4, %c0_5] : memref<1x8x128xbf16, #tpu.memory_space<vmem>>, vector<1x8x128xbf16>
    %6 = vector.shape_cast %5 : vector<1x8x128xbf16> to vector<8x128xbf16>
    %c0_6 = arith.constant 0 : index
    %c0_7 = arith.constant 0 : index
    %c0_8 = arith.constant 0 : index
    %7 = vector.load %arg4[%c0_6, %c0_7, %c0_8] : memref<1x8x128xbf16, #tpu.memory_space<vmem>>, vector<1x8x128xbf16>
    %8 = vector.shape_cast %7 : vector<1x8x128xbf16> to vector<8x128xbf16>
    %c0_9 = arith.constant 0 : index
    %c0_10 = arith.constant 0 : index
    %9 = vector.load %arg5[%c0_9, %c0_10] : memref<128x128xbf16, #tpu.memory_space<vmem>>, vector<128x128xbf16>
    %cst = arith.constant dense<0.000000e+00> : vector<8x128xf32>
    %10 = tpu.matmul %4, %9, %cst {dimension_numbers = #tpu.dot_dimension_numbers<[1], [0], [0], [1], [0, 0, 1, 1], [], []>} : vector<8x128xbf16>, vector<128x128xbf16>, vector<8x128xf32> -> vector<8x128xf32>
    %c0_11 = arith.constant 0 : index
    %c0_12 = arith.constant 0 : index
    %11 = vector.load %arg6[%c0_11, %c0_12] : memref<1x128xf32, #tpu.memory_space<vmem>>, vector<1x128xf32>
    %12 = vector.broadcast %11 : vector<1x128xf32> to vector<8x128xf32>
    %13 = arith.addf %10, %12 : vector<8x128xf32>
    %c0_13 = arith.constant 0 : index
    %c0_14 = arith.constant 0 : index
    %14 = vector.load %arg7[%c0_13, %c0_14] : memref<128x128xbf16, #tpu.memory_space<vmem>>, vector<128x128xbf16>
    %cst_15 = arith.constant dense<0.000000e+00> : vector<8x128xf32>
    %15 = tpu.matmul %6, %14, %cst_15 {dimension_numbers = #tpu.dot_dimension_numbers<[1], [0], [0], [1], [0, 0, 1, 1], [], []>} : vector<8x128xbf16>, vector<128x128xbf16>, vector<8x128xf32> -> vector<8x128xf32>
    %c0_16 = arith.constant 0 : index
    %c0_17 = arith.constant 0 : index
    %16 = vector.load %arg8[%c0_16, %c0_17] : memref<1x128xf32, #tpu.memory_space<vmem>>, vector<1x128xf32>
    %17 = vector.broadcast %16 : vector<1x128xf32> to vector<8x128xf32>
    %18 = arith.addf %15, %17 : vector<8x128xf32>
    %c0_18 = arith.constant 0 : index
    %c0_19 = arith.constant 0 : index
    %19 = vector.load %arg9[%c0_18, %c0_19] : memref<128x128xbf16, #tpu.memory_space<vmem>>, vector<128x128xbf16>
    %cst_20 = arith.constant dense<0.000000e+00> : vector<8x128xf32>
    %20 = tpu.matmul %8, %19, %cst_20 {dimension_numbers = #tpu.dot_dimension_numbers<[1], [0], [0], [1], [0, 0, 1, 1], [], []>} : vector<8x128xbf16>, vector<128x128xbf16>, vector<8x128xf32> -> vector<8x128xf32>
    %c0_21 = arith.constant 0 : index
    %c0_22 = arith.constant 0 : index
    %21 = vector.load %arg10[%c0_21, %c0_22] : memref<1x128xf32, #tpu.memory_space<vmem>>, vector<1x128xf32>
    %22 = vector.broadcast %21 : vector<1x128xf32> to vector<8x128xf32>
    %23 = arith.addf %20, %22 : vector<8x128xf32>
    %cst_23 = arith.constant 0.000000e+00 : f32
    %24 = vector.broadcast %cst_23 : f32 to vector<8x128xf32>
    %25 = arith.cmpf ogt, %13, %24 : vector<8x128xf32>
    %cst_24 = arith.constant 1.000000e+00 : f32
    %26 = vector.broadcast %cst_24 : f32 to vector<8x128xf32>
    %27 = arith.addf %13, %26 : vector<8x128xf32>
    %cst_25 = arith.constant 0.000000e+00 : f32
    %28 = vector.broadcast %cst_25 : f32 to vector<8x128xf32>
    %29 = arith.minimumf %13, %28 : vector<8x128xf32>
    %30 = math.exp %29 : vector<8x128xf32>
    %31 = arith.select %25, %27, %30 : vector<8x128xi1>, vector<8x128xf32>
    %cst_26 = arith.constant 0.000000e+00 : f32
    %32 = vector.broadcast %cst_26 : f32 to vector<8x128xf32>
    %33 = arith.cmpf ogt, %18, %32 : vector<8x128xf32>
    %cst_27 = arith.constant 1.000000e+00 : f32
    %34 = vector.broadcast %cst_27 : f32 to vector<8x128xf32>
    %35 = arith.addf %18, %34 : vector<8x128xf32>
    %cst_28 = arith.constant 0.000000e+00 : f32
    %36 = vector.broadcast %cst_28 : f32 to vector<8x128xf32>
    %37 = arith.minimumf %18, %36 : vector<8x128xf32>
    %38 = math.exp %37 : vector<8x128xf32>
    %39 = arith.select %33, %35, %38 : vector<8x128xi1>, vector<8x128xf32>
    %40 = arith.mulf %39, %23 : vector<8x128xf32>
    %41 = arith.truncf %40 : vector<8x128xf32> to vector<8x128xbf16>
    %42 = arith.truncf %39 : vector<8x128xf32> to vector<8x128xbf16>
    %c0_29 = arith.constant 0 : index
    %c0_30 = arith.constant 0 : index
    %43 = vector.load %arg13[%c0_29, %c0_30] : memref<8x8xbf16, #tpu.memory_space<vmem>>, vector<8x8xbf16>
    %cst_31 = arith.constant dense<0.000000e+00> : vector<8x128xf32>
    %44 = tpu.matmul %43, %41, %cst_31 {dimension_numbers = #tpu.dot_dimension_numbers<[1], [0], [0], [1], [0, 0, 1, 1], [], []>} : vector<8x8xbf16>, vector<8x128xbf16>, vector<8x128xf32> -> vector<8x128xf32>
    %c0_32 = arith.constant 0 : index
    %c0_33 = arith.constant 0 : index
    %45 = vector.load %arg16[%c0_32, %c0_33] : memref<1x128xf32, #tpu.memory_space<vmem>>, vector<1x128xf32>
    %46 = vector.broadcast %45 : vector<1x128xf32> to vector<8x128xf32>
    %47 = arith.addf %44, %46 : vector<8x128xf32>
    %c0_34 = arith.constant 0 : index
    %c0_35 = arith.constant 0 : index
    %48 = vector.load %arg13[%c0_34, %c0_35] : memref<8x8xbf16, #tpu.memory_space<vmem>>, vector<8x8xbf16>
    %cst_36 = arith.constant dense<0.000000e+00> : vector<8x128xf32>
    %49 = tpu.matmul %48, %42, %cst_36 {dimension_numbers = #tpu.dot_dimension_numbers<[1], [0], [0], [1], [0, 0, 1, 1], [], []>} : vector<8x8xbf16>, vector<8x128xbf16>, vector<8x128xf32> -> vector<8x128xf32>
    %c0_37 = arith.constant 0 : index
    %c0_38 = arith.constant 0 : index
    %50 = vector.load %arg17[%c0_37, %c0_38] : memref<1x128xf32, #tpu.memory_space<vmem>>, vector<1x128xf32>
    %51 = vector.broadcast %50 : vector<1x128xf32> to vector<8x128xf32>
    %52 = arith.addf %49, %51 : vector<8x128xf32>
    %53 = vector.extract_strided_slice %47 {offsets = [7, 0], sizes = [1, 128], strides = [1, 1]} : vector<8x128xf32> to vector<1x128xf32>
    %c0_39 = arith.constant 0 : index
    %c0_40 = arith.constant 0 : index
    %54 = vector.load %arg16[%c0_39, %c0_40] : memref<1x128xf32, #tpu.memory_space<vmem>>, vector<1x128xf32>
    tpu.vector_store %arg16[%c0_39, %c0_40], %53 {strides = array<i32>} : memref<1x128xf32, #tpu.memory_space<vmem>>, vector<1x128xf32>,
    %55 = vector.extract_strided_slice %52 {offsets = [7, 0], sizes = [1, 128], strides = [1, 1]} : vector<8x128xf32> to vector<1x128xf32>
    %c0_41 = arith.constant 0 : index
    %c0_42 = arith.constant 0 : index
    %56 = vector.load %arg17[%c0_41, %c0_42] : memref<1x128xf32, #tpu.memory_space<vmem>>, vector<1x128xf32>
    tpu.vector_store %arg17[%c0_41, %c0_42], %55 {strides = array<i32>} : memref<1x128xf32, #tpu.memory_space<vmem>>, vector<1x128xf32>,
    %57 = arith.mulf %31, %47 : vector<8x128xf32>
    %58 = arith.mulf %31, %52 : vector<8x128xf32>
    %59 = arith.truncf %58 : vector<8x128xf32> to vector<8x128xbf16>
    %c0_43 = arith.constant 0 : index
    %c0_44 = arith.constant 0 : index
    %60 = vector.load %arg14[%c0_43, %c0_44] : memref<128x128xbf16, #tpu.memory_space<vmem>>, vector<128x128xbf16>
    %cst_45 = arith.constant dense<0.000000e+00> : vector<8x128xf32>
    %61 = tpu.matmul %59, %60, %cst_45 {dimension_numbers = #tpu.dot_dimension_numbers<[1], [0], [0], [1], [0, 0, 1, 1], [], []>} : vector<8x128xbf16>, vector<128x128xbf16>, vector<8x128xf32> -> vector<8x128xf32>
    %cst_46 = arith.constant 9.99999997E-7 : f32
    %62 = vector.broadcast %cst_46 : f32 to vector<8x128xf32>
    %63 = arith.addf %61, %62 : vector<8x128xf32>
    %64 = tpu.reciprocal %63 {approx = true} : vector<8x128xf32> -> vector<8x128xf32>
    %65 = arith.mulf %57, %64 : vector<8x128xf32>
    %66 = arith.truncf %65 : vector<8x128xf32> to vector<8x128xbf16>
    %c0_47 = arith.constant 0 : index
    %c0_48 = arith.constant 0 : index
    %67 = vector.load %arg11[%c0_47, %c0_48] : memref<128x128xbf16, #tpu.memory_space<vmem>>, vector<128x128xbf16>
    %cst_49 = arith.constant dense<0.000000e+00> : vector<8x128xf32>
    %68 = tpu.matmul %66, %67, %cst_49 {dimension_numbers = #tpu.dot_dimension_numbers<[1], [0], [0], [1], [0, 0, 1, 1], [], []>} : vector<8x128xbf16>, vector<128x128xbf16>, vector<8x128xf32> -> vector<8x128xf32>
    %c0_50 = arith.constant 0 : index
    %c0_51 = arith.constant 0 : index
    %69 = vector.load %arg12[%c0_50, %c0_51] : memref<1x128xf32, #tpu.memory_space<vmem>>, vector<1x128xf32>
    %70 = vector.broadcast %69 : vector<1x128xf32> to vector<8x128xf32>
    %71 = arith.addf %68, %70 : vector<8x128xf32>
    %c0_52 = arith.constant 0 : index
    %c0_53 = arith.constant 0 : index
    %c0_54 = arith.constant 0 : index
    %72 = vector.load %arg15[%c0_52, %c0_53, %c0_54] : memref<1x8x128xf32, #tpu.memory_space<vmem>>, vector<1x8x128xf32>
    %73 = vector.shape_cast %72 : vector<1x8x128xf32> to vector<8x128xf32>
    %74 = vector.shape_cast %71 : vector<8x128xf32> to vector<1x8x128xf32>
    tpu.vector_store %arg15[%c0_52, %c0_53, %c0_54], %74 {strides = array<i32>} : memref<1x8x128xf32, #tpu.memory_space<vmem>>, vector<1x8x128xf32>,
    return
  }
  func.func @transform_0(%arg0: i32, %arg1: i32) -> (i32, i32, i32) {
    %c0_i32 = arith.constant 0 : i32
    %c0_i32_0 = arith.constant 0 : i32
    return %arg0, %arg1, %c0_i32 : i32, i32, i32
  }
  func.func @transform_1(%arg0: i32, %arg1: i32) -> (i32, i32, i32) {
    %c0_i32 = arith.constant 0 : i32
    %c0_i32_0 = arith.constant 0 : i32
    return %arg0, %arg1, %c0_i32 : i32, i32, i32
  }
  func.func @transform_2(%arg0: i32, %arg1: i32) -> (i32, i32, i32) {
    %c0_i32 = arith.constant 0 : i32
    %c0_i32_0 = arith.constant 0 : i32
    return %arg0, %arg1, %c0_i32 : i32, i32, i32
  }
  func.func @transform_3(%arg0: i32, %arg1: i32) -> (i32, i32) {
    %c0_i32 = arith.constant 0 : i32
    %c0_i32_0 = arith.constant 0 : i32
    %c0_i32_1 = arith.constant 0 : i32
    return %c0_i32, %c0_i32_0 : i32, i32
  }
  func.func @transform_4(%arg0: i32, %arg1: i32) -> (i32, i32) {
    %c0_i32 = arith.constant 0 : i32
    %c0_i32_0 = arith.constant 0 : i32
    %c0_i32_1 = arith.constant 0 : i32
    return %c0_i32, %c0_i32_0 : i32, i32
  }
  func.func @transform_5(%arg0: i32, %arg1: i32) -> (i32, i32) {
    %c0_i32 = arith.constant 0 : i32
    %c0_i32_0 = arith.constant 0 : i32
    %c0_i32_1 = arith.constant 0 : i32
    return %c0_i32, %c0_i32_0 : i32, i32
  }
  func.func @transform_6(%arg0: i32, %arg1: i32) -> (i32, i32) {
    %c0_i32 = arith.constant 0 : i32
    %c0_i32_0 = arith.constant 0 : i32
    %c0_i32_1 = arith.constant 0 : i32
    return %c0_i32, %c0_i32_0 : i32, i32
  }
  func.func @transform_7(%arg0: i32, %arg1: i32) -> (i32, i32) {
    %c0_i32 = arith.constant 0 : i32
    %c0_i32_0 = arith.constant 0 : i32
    %c0_i32_1 = arith.constant 0 : i32
    return %c0_i32, %c0_i32_0 : i32, i32
  }
  func.func @transform_8(%arg0: i32, %arg1: i32) -> (i32, i32) {
    %c0_i32 = arith.constant 0 : i32
    %c0_i32_0 = arith.constant 0 : i32
    %c0_i32_1 = arith.constant 0 : i32
    return %c0_i32, %c0_i32_0 : i32, i32
  }
  func.func @transform_9(%arg0: i32, %arg1: i32) -> (i32, i32) {
    %c0_i32 = arith.constant 0 : i32
    %c0_i32_0 = arith.constant 0 : i32
    %c0_i32_1 = arith.constant 0 : i32
    return %c0_i32, %c0_i32_0 : i32, i32
  }
  func.func @transform_10(%arg0: i32, %arg1: i32) -> (i32, i32) {
    %c0_i32 = arith.constant 0 : i32
    %c0_i32_0 = arith.constant 0 : i32
    %c0_i32_1 = arith.constant 0 : i32
    return %c0_i32, %c0_i32_0 : i32, i32
  }
  func.func @transform_11(%arg0: i32, %arg1: i32) -> (i32, i32) {
    %c0_i32 = arith.constant 0 : i32
    %c0_i32_0 = arith.constant 0 : i32
    %c0_i32_1 = arith.constant 0 : i32
    return %c0_i32, %c0_i32_0 : i32, i32
  }
  func.func @transform_12(%arg0: i32, %arg1: i32) -> (i32, i32) {
    %c0_i32 = arith.constant 0 : i32
    %c0_i32_0 = arith.constant 0 : i32
    %c0_i32_1 = arith.constant 0 : i32
    return %c0_i32, %c0_i32_0 : i32, i32
  }
  func.func @transform_13(%arg0: i32, %arg1: i32) -> (i32, i32, i32) {
    %c0_i32 = arith.constant 0 : i32
    %c0_i32_0 = arith.constant 0 : i32
    return %arg0, %arg1, %c0_i32 : i32, i32, i32
  }
}

</mosaic_0001>

<llo_original>
// kernel: tpu_custom_call.1
$region0: #{tpu_custom_call.1}
  #allocation0 [shape = 'u32[]', space=smem, size = 0x4, offset = 0x4, fixed_abs, tag = 'smem constant byte address 0x4 - core index']
  #allocation1 [shape = 'u32[144,128]{1,0:T(1,128)}', space=vmem, size = 0x12000, scoped, tag = 'internal scratch']
  #allocation2 [shape = 'f32[1,128]{1,0:T(1,128)}', space=vmem, size = 0x200, scoped, tag = 'scratch operand']
  #allocation3 [shape = 'f32[1,128]{1,0:T(1,128)}', space=vmem, size = 0x200, scoped, tag = 'scratch operand']
  %s0 = inlined_call_operand.hbm [shape: bf16[2,16,128], index: 0, kind: input, shape index: {}]
  %s1 = inlined_call_operand.hbm [shape: bf16[2,16,128], index: 1, kind: input, shape index: {}]
  %s2 = inlined_call_operand.hbm [shape: bf16[2,16,128], index: 2, kind: input, shape index: {}]
  %s3 = inlined_call_operand.hbm [shape: bf16[128,128], index: 3, kind: input, shape index: {}]
  %s4 = inlined_call_operand.vmem [shape: f32[1,128], index: 4, kind: input, shape index: {}]
  %s5 = inlined_call_operand.hbm [shape: bf16[128,128], index: 5, kind: input, shape index: {}]
  %s6 = inlined_call_operand.vmem [shape: f32[1,128], index: 6, kind: input, shape index: {}]
  %s7 = inlined_call_operand.hbm [shape: bf16[128,128], index: 7, kind: input, shape index: {}]
  %s8 = inlined_call_operand.vmem [shape: f32[1,128], index: 8, kind: input, shape index: {}]
  %s9 = inlined_call_operand.hbm [shape: bf16[128,128], index: 9, kind: input, shape index: {}]
  %s10 = inlined_call_operand.vmem [shape: f32[1,128], index: 10, kind: input, shape index: {}]
  %s11 = inlined_call_operand.vmem [shape: bf16[8,8], index: 11, kind: input, shape index: {}]
  %s12 = inlined_call_operand.hbm [shape: bf16[128,128], index: 12, kind: input, shape index: {}]
  %s13 = inlined_call_operand.hbm [shape: f32[2,16,128], index: 13, kind: output, shape index: {}]
  %s14 = sld [smem:[#allocation0]]
  $region121: #{tpu_custom_call.1} parent=0
    _
  %s16 = ssub.s32 1, %s14
  %s17 = scalar_select 0, %s16, %s14
  $region1: #{tpu_custom_call.1} parent=0
    #allocation4 [shape = 'u8[4096]{0}', space=vmem, size = 0x1000, scoped, tag = 'input window, operand 0']
    #allocation5 [shape = 's32[2]{0}', space=sflag, size = 0x8, scoped, tag = 'scoped memory for tpu_custom_call.1']
    #allocation6 [shape = 's32[2]{0}', space=sflag, size = 0x8, scoped, tag = 'scoped memory for tpu_custom_call.1']
    #allocation7 [shape = 'u8[4096]{0}', space=vmem, size = 0x1000, scoped, tag = 'input window, operand 1']
    #allocation8 [shape = 's32[2]{0}', space=sflag, size = 0x8, scoped, tag = 'scoped memory for tpu_custom_call.1']
    #allocation9 [shape = 'u8[4096]{0}', space=vmem, size = 0x1000, scoped, tag = 'input window, operand 2']
    #allocation10 [shape = 'u8[32768]{0}', space=vmem, size = 0x8000, scoped, tag = 'input window, operand 3, single buffered']
    #allocation11 [shape = 's32[1]{0}', space=sflag, size = 0x4, scoped, tag = 'scoped memory for tpu_custom_call.1']
    #allocation12 [shape = 'u8[32768]{0}', space=vmem, size = 0x8000, scoped, tag = 'input window, operand 5, single buffered']
    #allocation13 [shape = 'u8[32768]{0}', space=vmem, size = 0x8000, scoped, tag = 'input window, operand 7, single buffered']
    #allocation14 [shape = 's32[1]{0}', space=sflag, size = 0x4, scoped, tag = 'scoped memory for tpu_custom_call.1']
    #allocation15 [shape = 'u8[32768]{0}', space=vmem, size = 0x8000, scoped, tag = 'input window, operand 9, single buffered']
    #allocation16 [shape = 'u8[32768]{0}', space=vmem, size = 0x8000, scoped, tag = 'input window, operand 12, single buffered']
    #allocation17 [shape = 's32[1]{0}', space=sflag, size = 0x4, scoped, tag = 'scoped memory for tpu_custom_call.1']
    #allocation18 [shape = 'u8[8192]{0}', space=vmem, size = 0x2000, scoped, tag = 'output window, operand 0']
    %18 = vsyncpa [#allocation5], 0
    %s19 = scalar_lea.sflag [#allocation5], 1
    %20 = vsyncpa %s19, 0
    %21 = vsyncpa [#allocation8], 0
    %s22 = scalar_lea.sflag [#allocation8], 1
    %23 = vsyncpa %s22, 0
    %24 = vsyncpa [#allocation11], 0
    %25 = vsyncpa [#allocation14], 0
    %26 = vsyncpa [#allocation17], 0
    %27 = vsyncpa [#allocation6], 0
    %s28 = scalar_lea.sflag [#allocation6], 1
    %29 = vsyncpa %s28, 0
    loop: start=0, step=1, limit=6
    $region2: #{tpu_custom_call.1} parent=1 // loop_pre_header
      _
    $region3: #{tpu_custom_call.1} parent=1 // loop_header
      %s31 = sphi 0, %s35
      %p32 = scmp.ge.s32.totalorder %s31, 6
      %s38 = sphi 0, %s50
      %s39 = sphi 0, %s46
      %s40 = sphi 0, %s38
      %s41 = sphi 0, %s39
      %s42 = sphi 0, %s40
      %s43 = sphi 0, %s41
      %s55 = sphi 0, %s57
      %s58 = sphi 0, %s55
      %s59 = sphi 0, %s58
      %s75 = sphi 0, %s59
      %s83 = sphi 0, %s85
      %s86 = sphi 0, %s83
      %s87 = sphi 0, %s86
      %s103 = sphi 0, %s87
      %s111 = sphi 0, %s113
      %s114 = sphi 0, %s111
      %s115 = sphi 0, %s114
      %s131 = sphi 0, %s115
      %s135 = sphi 0, %s135
      %s137 = sphi 0, %s135
      %s138 = sphi 0, %s137
      %s152 = sphi 0, %s138
      %s156 = sphi 0, %s156
      %s158 = sphi 0, %s156
      %s159 = sphi 0, %s158
      %s173 = sphi 0, %s159
      %s177 = sphi 0, %s177
      %s179 = sphi 0, %s177
      %s180 = sphi 0, %s179
      %s194 = sphi 0, %s180
      %s198 = sphi 0, %s198
      %s200 = sphi 0, %s198
      %s201 = sphi 0, %s200
      %s215 = sphi 0, %s201
      %s219 = sphi 0, %s219
      %s221 = sphi 0, %s219
      %s222 = sphi 0, %s221
      %s236 = sphi 0, %s222
      %s240 = sphi 0, %s240
      %s242 = sphi 0, %s240
      %s243 = sphi 0, %s242
      %s257 = sphi 0, %s243
      %s261 = sphi 0, %s261
      %s263 = sphi 0, %s261
      %s264 = sphi 0, %s263
      %s278 = sphi 0, %s264
      %s282 = sphi 0, %s282
      %s284 = sphi 0, %s282
      %s285 = sphi 0, %s284
      %s299 = sphi 0, %s285
      %s303 = sphi 0, %s303
      %s305 = sphi 0, %s303
      %s306 = sphi 0, %s305
      %s320 = sphi 0, %s306
      %s324 = sphi 0, %s324
      %s326 = sphi 0, %s324
      %s327 = sphi 0, %s326
      %s341 = sphi 0, %s327
      %s349 = sphi 0, %s351
      %s352 = sphi 0, %s349
      %s353 = sphi 0, %s352
      %s369 = sphi 0, %s353
    $region4: #{tpu_custom_call.1} parent=1 // loop_header_branch
      %34 = sbr.rel (%p32) target = $region8
    $region5: #{tpu_custom_call.1} parent=1 // loop_body
      %s36 = ssub.s32 %s31, 1
      %s37 = ssub.s32 %s31, 2
      %s44 = sadd.s32 1, %s39
      %p45 = scmp.ge.s32.totalorder %s44, 2
      %s46 = scalar_select %p45, 0, %s44
      %s47 = sadd.s32 1, %s38
      %s48 = scalar_select %p45, %s47, %s38
      %p49 = scmp.ge.s32.totalorder %s48, 2
      %s50 = scalar_select %p49, 0, %s48
      %s51 = ssub.s32 %s38, %s50
      %s52 = ssub.s32 %s39, %s46
      %s53 = sor.u32 %s51, %s52
      %p54 = scmp.eq.s32.totalorder %s53, 0
      %s56 = sadd.s32 %s55, 1
      %s57 = scalar_select %p54, %s55, %s56
      %p60 = pneg %p54
      %p61 = scmp.eq.s32.totalorder %s31, 3
      %p62 = por %p60, %p61
      %p63 = scmp.ne.s32.totalorder %s55, %s58
      %p64 = scmp.eq.s32.totalorder %s31, 0
      %p65 = por %p63, %p64
      %p66 = scmp.ne.s32.totalorder %s55, %s58
      %p67 = scmp.eq.s32.totalorder %s36, 3
      %p68 = por %p66, %p67
      %p69 = scmp.ne.s32.totalorder %s58, %s59
      %p70 = scmp.eq.s32.totalorder %s36, 0
      %p71 = por %p69, %p70
      %p72 = scmp.ne.s32.totalorder %s58, %s59
      %p73 = scmp.eq.s32.totalorder %s37, 3
      %p74 = por %p72, %p73
      %p76 = scmp.ne.s32.totalorder %s59, %s75
      %p77 = scmp.eq.s32.totalorder %s37, 0
      %p78 = por %p76, %p77
      %s79 = ssub.s32 %s38, %s50
      %s80 = ssub.s32 %s39, %s46
      %s81 = sor.u32 %s79, %s80
      %p82 = scmp.eq.s32.totalorder %s81, 0
      %s84 = sadd.s32 %s83, 1
      %s85 = scalar_select %p82, %s83, %s84
      %p88 = pneg %p82
      %p89 = scmp.eq.s32.totalorder %s31, 3
      %p90 = por %p88, %p89
      %p91 = scmp.ne.s32.totalorder %s83, %s86
      %p92 = scmp.eq.s32.totalorder %s31, 0
      %p93 = por %p91, %p92
      %p94 = scmp.ne.s32.totalorder %s83, %s86
      %p95 = scmp.eq.s32.totalorder %s36, 3
      %p96 = por %p94, %p95
      %p97 = scmp.ne.s32.totalorder %s86, %s87
      %p98 = scmp.eq.s32.totalorder %s36, 0
      %p99 = por %p97, %p98
      %p100 = scmp.ne.s32.totalorder %s86, %s87
      %p101 = scmp.eq.s32.totalorder %s37, 3
      %p102 = por %p100, %p101
      %p104 = scmp.ne.s32.totalorder %s87, %s103
      %p105 = scmp.eq.s32.totalorder %s37, 0
      %p106 = por %p104, %p105
      %s107 = ssub.s32 %s38, %s50
      %s108 = ssub.s32 %s39, %s46
      %s109 = sor.u32 %s107, %s108
      %p110 = scmp.eq.s32.totalorder %s109, 0
      %s112 = sadd.s32 %s111, 1
      %s113 = scalar_select %p110, %s111, %s112
      %p116 = pneg %p110
      %p117 = scmp.eq.s32.totalorder %s31, 3
      %p118 = por %p116, %p117
      %p119 = scmp.ne.s32.totalorder %s111, %s114
      %p120 = scmp.eq.s32.totalorder %s31, 0
      %p121 = por %p119, %p120
      %p122 = scmp.ne.s32.totalorder %s111, %s114
      %p123 = scmp.eq.s32.totalorder %s36, 3
      %p124 = por %p122, %p123
      %p125 = scmp.ne.s32.totalorder %s114, %s115
      %p126 = scmp.eq.s32.totalorder %s36, 0
      %p127 = por %p125, %p126
      %p128 = scmp.ne.s32.totalorder %s114, %s115
      %p129 = scmp.eq.s32.totalorder %s37, 3
      %p130 = por %p128, %p129
      %p132 = scmp.ne.s32.totalorder %s115, %s131
      %p133 = scmp.eq.s32.totalorder %s37, 0
      %p134 = por %p132, %p133
      %s136 = sadd.s32 %s135, 1
      %p139 = scmp.eq.s32.totalorder %s31, 3
      %p140 = scmp.ne.s32.totalorder %s135, %s137
      %p141 = scmp.eq.s32.totalorder %s31, 0
      %p142 = por %p140, %p141
      %p143 = scmp.ne.s32.totalorder %s135, %s137
      %p144 = scmp.eq.s32.totalorder %s36, 3
      %p145 = por %p143, %p144
      %p146 = scmp.ne.s32.totalorder %s137, %s138
      %p147 = scmp.eq.s32.totalorder %s36, 0
      %p148 = por %p146, %p147
      %p149 = scmp.ne.s32.totalorder %s137, %s138
      %p150 = scmp.eq.s32.totalorder %s37, 3
      %p151 = por %p149, %p150
      %p153 = scmp.ne.s32.totalorder %s138, %s152
      %p154 = scmp.eq.s32.totalorder %s37, 0
      %p155 = por %p153, %p154
      %s157 = sadd.s32 %s156, 1
      %p160 = scmp.eq.s32.totalorder %s31, 3
      %p161 = scmp.ne.s32.totalorder %s156, %s158
      %p162 = scmp.eq.s32.totalorder %s31, 0
      %p163 = por %p161, %p162
      %p164 = scmp.ne.s32.totalorder %s156, %s158
      %p165 = scmp.eq.s32.totalorder %s36, 3
      %p166 = por %p164, %p165
      %p167 = scmp.ne.s32.totalorder %s158, %s159
      %p168 = scmp.eq.s32.totalorder %s36, 0
      %p169 = por %p167, %p168
      %p170 = scmp.ne.s32.totalorder %s158, %s159
      %p171 = scmp.eq.s32.totalorder %s37, 3
      %p172 = por %p170, %p171
      %p174 = scmp.ne.s32.totalorder %s159, %s173
      %p175 = scmp.eq.s32.totalorder %s37, 0
      %p176 = por %p174, %p175
      %s178 = sadd.s32 %s177, 1
      %p181 = scmp.eq.s32.totalorder %s31, 3
      %p182 = scmp.ne.s32.totalorder %s177, %s179
      %p183 = scmp.eq.s32.totalorder %s31, 0
      %p184 = por %p182, %p183
      %p185 = scmp.ne.s32.totalorder %s177, %s179
      %p186 = scmp.eq.s32.totalorder %s36, 3
      %p187 = por %p185, %p186
      %p188 = scmp.ne.s32.totalorder %s179, %s180
      %p189 = scmp.eq.s32.totalorder %s36, 0
      %p190 = por %p188, %p189
      %p191 = scmp.ne.s32.totalorder %s179, %s180
      %p192 = scmp.eq.s32.totalorder %s37, 3
      %p193 = por %p191, %p192
      %p195 = scmp.ne.s32.totalorder %s180, %s194
      %p196 = scmp.eq.s32.totalorder %s37, 0
      %p197 = por %p195, %p196
      %s199 = sadd.s32 %s198, 1
      %p202 = scmp.eq.s32.totalorder %s31, 3
      %p203 = scmp.ne.s32.totalorder %s198, %s200
      %p204 = scmp.eq.s32.totalorder %s31, 0
      %p205 = por %p203, %p204
      %p206 = scmp.ne.s32.totalorder %s198, %s200
      %p207 = scmp.eq.s32.totalorder %s36, 3
      %p208 = por %p206, %p207
      %p209 = scmp.ne.s32.totalorder %s200, %s201
      %p210 = scmp.eq.s32.totalorder %s36, 0
      %p211 = por %p209, %p210
      %p212 = scmp.ne.s32.totalorder %s200, %s201
      %p213 = scmp.eq.s32.totalorder %s37, 3
      %p214 = por %p212, %p213
      %p216 = scmp.ne.s32.totalorder %s201, %s215
      %p217 = scmp.eq.s32.totalorder %s37, 0
      %p218 = por %p216, %p217
      %s220 = sadd.s32 %s219, 1
      %p223 = scmp.eq.s32.totalorder %s31, 3
      %p224 = scmp.ne.s32.totalorder %s219, %s221
      %p225 = scmp.eq.s32.totalorder %s31, 0
      %p226 = por %p224, %p225
      %p227 = scmp.ne.s32.totalorder %s219, %s221
      %p228 = scmp.eq.s32.totalorder %s36, 3
      %p229 = por %p227, %p228
      %p230 = scmp.ne.s32.totalorder %s221, %s222
      %p231 = scmp.eq.s32.totalorder %s36, 0
      %p232 = por %p230, %p231
      %p233 = scmp.ne.s32.totalorder %s221, %s222
      %p234 = scmp.eq.s32.totalorder %s37, 3
      %p235 = por %p233, %p234
      %p237 = scmp.ne.s32.totalorder %s222, %s236
      %p238 = scmp.eq.s32.totalorder %s37, 0
      %p239 = por %p237, %p238
      %s241 = sadd.s32 %s240, 1
      %p244 = scmp.eq.s32.totalorder %s31, 3
      %p245 = scmp.ne.s32.totalorder %s240, %s242
      %p246 = scmp.eq.s32.totalorder %s31, 0
      %p247 = por %p245, %p246
      %p248 = scmp.ne.s32.totalorder %s240, %s242
      %p249 = scmp.eq.s32.totalorder %s36, 3
      %p250 = por %p248, %p249
      %p251 = scmp.ne.s32.totalorder %s242, %s243
      %p252 = scmp.eq.s32.totalorder %s36, 0
      %p253 = por %p251, %p252
      %p254 = scmp.ne.s32.totalorder %s242, %s243
      %p255 = scmp.eq.s32.totalorder %s37, 3
      %p256 = por %p254, %p255
      %p258 = scmp.ne.s32.totalorder %s243, %s257
      %p259 = scmp.eq.s32.totalorder %s37, 0
      %p260 = por %p258, %p259
      %s262 = sadd.s32 %s261, 1
      %p265 = scmp.eq.s32.totalorder %s31, 3
      %p266 = scmp.ne.s32.totalorder %s261, %s263
      %p267 = scmp.eq.s32.totalorder %s31, 0
      %p268 = por %p266, %p267
      %p269 = scmp.ne.s32.totalorder %s261, %s263
      %p270 = scmp.eq.s32.totalorder %s36, 3
      %p271 = por %p269, %p270
      %p272 = scmp.ne.s32.totalorder %s263, %s264
      %p273 = scmp.eq.s32.totalorder %s36, 0
      %p274 = por %p272, %p273
      %p275 = scmp.ne.s32.totalorder %s263, %s264
      %p276 = scmp.eq.s32.totalorder %s37, 3
      %p277 = por %p275, %p276
      %p279 = scmp.ne.s32.totalorder %s264, %s278
      %p280 = scmp.eq.s32.totalorder %s37, 0
      %p281 = por %p279, %p280
      %s283 = sadd.s32 %s282, 1
      %p286 = scmp.eq.s32.totalorder %s31, 3
      %p287 = scmp.ne.s32.totalorder %s282, %s284
      %p288 = scmp.eq.s32.totalorder %s31, 0
      %p289 = por %p287, %p288
      %p290 = scmp.ne.s32.totalorder %s282, %s284
      %p291 = scmp.eq.s32.totalorder %s36, 3
      %p292 = por %p290, %p291
      %p293 = scmp.ne.s32.totalorder %s284, %s285
      %p294 = scmp.eq.s32.totalorder %s36, 0
      %p295 = por %p293, %p294
      %p296 = scmp.ne.s32.totalorder %s284, %s285
      %p297 = scmp.eq.s32.totalorder %s37, 3
      %p298 = por %p296, %p297
      %p300 = scmp.ne.s32.totalorder %s285, %s299
      %p301 = scmp.eq.s32.totalorder %s37, 0
      %p302 = por %p300, %p301
      %s304 = sadd.s32 %s303, 1
      %p307 = scmp.eq.s32.totalorder %s31, 3
      %p308 = scmp.ne.s32.totalorder %s303, %s305
      %p309 = scmp.eq.s32.totalorder %s31, 0
      %p310 = por %p308, %p309
      %p311 = scmp.ne.s32.totalorder %s303, %s305
      %p312 = scmp.eq.s32.totalorder %s36, 3
      %p313 = por %p311, %p312
      %p314 = scmp.ne.s32.totalorder %s305, %s306
      %p315 = scmp.eq.s32.totalorder %s36, 0
      %p316 = por %p314, %p315
      %p317 = scmp.ne.s32.totalorder %s305, %s306
      %p318 = scmp.eq.s32.totalorder %s37, 3
      %p319 = por %p317, %p318
      %p321 = scmp.ne.s32.totalorder %s306, %s320
      %p322 = scmp.eq.s32.totalorder %s37, 0
      %p323 = por %p321, %p322
      %s325 = sadd.s32 %s324, 1
      %p328 = scmp.eq.s32.totalorder %s31, 3
      %p329 = scmp.ne.s32.totalorder %s324, %s326
      %p330 = scmp.eq.s32.totalorder %s31, 0
      %p331 = por %p329, %p330
      %p332 = scmp.ne.s32.totalorder %s324, %s326
      %p333 = scmp.eq.s32.totalorder %s36, 3
      %p334 = por %p332, %p333
      %p335 = scmp.ne.s32.totalorder %s326, %s327
      %p336 = scmp.eq.s32.totalorder %s36, 0
      %p337 = por %p335, %p336
      %p338 = scmp.ne.s32.totalorder %s326, %s327
      %p339 = scmp.eq.s32.totalorder %s37, 3
      %p340 = por %p338, %p339
      %p342 = scmp.ne.s32.totalorder %s327, %s341
      %p343 = scmp.eq.s32.totalorder %s37, 0
      %p344 = por %p342, %p343
      %s345 = ssub.s32 %s38, %s50
      %s346 = ssub.s32 %s39, %s46
      %s347 = sor.u32 %s345, %s346
      %p348 = scmp.eq.s32.totalorder %s347, 0
      %s350 = sadd.s32 %s349, 1
      %s351 = scalar_select %p348, %s349, %s350
      %p354 = pneg %p348
      %p355 = scmp.eq.s32.totalorder %s31, 3
      %p356 = por %p354, %p355
      %p357 = scmp.ne.s32.totalorder %s349, %s352
      %p358 = scmp.eq.s32.totalorder %s31, 0
      %p359 = por %p357, %p358
      %p360 = scmp.ne.s32.totalorder %s349, %s352
      %p361 = scmp.eq.s32.totalorder %s36, 3
      %p362 = por %p360, %p361
      %p363 = scmp.ne.s32.totalorder %s352, %s353
      %p364 = scmp.eq.s32.totalorder %s36, 0
      %p365 = por %p363, %p364
      %p366 = scmp.ne.s32.totalorder %s352, %s353
      %p367 = scmp.eq.s32.totalorder %s37, 3
      %p368 = por %p366, %p367
      %p370 = scmp.ne.s32.totalorder %s353, %s369
      %p371 = scmp.eq.s32.totalorder %s37, 0
      %p372 = por %p370, %p371
      %p373 = scmp.le.s32.totalorder 1, %s31
      %p374 = scmp.lt.s32.totalorder %s31, 5
      %p375 = pnand %p373, %p374
      %p376 = pneg %p375
      // Predicated region
      $region9: #{tpu_custom_call.1} parent=5 // pred_check
        _
      $region10: #{tpu_custom_call.1} parent=5 // pred_check_branch
        %378 = sbr.rel (%p375) target = $region12
      $region11: #{tpu_custom_call.1} parent=5 // pred_region
        %s379 = ssub.s32 %s31, 1
        // Predicated region
        $region13: #{tpu_custom_call.1} parent=11 // pred_check
          %p380 = pneg %p148
        $region14: #{tpu_custom_call.1} parent=11 // pred_check_branch
          %382 = sbr.rel (%p380) target = $region16
        $region15: #{tpu_custom_call.1} parent=11 // pred_region
          %s384 = ssub.s32 1024, 1024
          %385 = vsyncadd [#allocation11], %s384
          %s386 = sshll.u32 [#allocation10], 4
          %s387 = int_to_ptr.vmem [resolvable:$true] %s386
          %392 = dma.hbm_to_vmem [thread:$0]  %s3, 1024, %s387, [#allocation11], 64, 64, 4
        $region16: #{tpu_custom_call.1} parent=11 // pred_fallthru
          _
        // Predicated region
        $region17: #{tpu_custom_call.1} parent=11 // pred_check
          %p393 = pneg %p169
        $region18: #{tpu_custom_call.1} parent=11 // pred_check_branch
          %395 = sbr.rel (%p393) target = $region20
        $region19: #{tpu_custom_call.1} parent=11 // pred_region
          _
        $region20: #{tpu_custom_call.1} parent=11 // pred_fallthru
          _
        // Predicated region
        $region21: #{tpu_custom_call.1} parent=11 // pred_check
          %p396 = pneg %p190
        $region22: #{tpu_custom_call.1} parent=11 // pred_check_branch
          %398 = sbr.rel (%p396) target = $region24
        $region23: #{tpu_custom_call.1} parent=11 // pred_region
          %s400 = ssub.s32 1024, 1024
          %401 = vsyncadd [#allocation11], %s400
          %s402 = sshll.u32 [#allocation12], 4
          %s403 = int_to_ptr.vmem [resolvable:$true] %s402
          %408 = dma.hbm_to_vmem [thread:$0]  %s5, 1024, %s403, [#allocation11], 64, 64, 4
        $region24: #{tpu_custom_call.1} parent=11 // pred_fallthru
          _
        // Predicated region
        $region25: #{tpu_custom_call.1} parent=11 // pred_check
          %p409 = pneg %p211
        $region26: #{tpu_custom_call.1} parent=11 // pred_check_branch
          %411 = sbr.rel (%p409) target = $region28
        $region27: #{tpu_custom_call.1} parent=11 // pred_region
          _
        $region28: #{tpu_custom_call.1} parent=11 // pred_fallthru
          _
        // Predicated region
        $region29: #{tpu_custom_call.1} parent=11 // pred_check
          %p412 = pneg %p232
        $region30: #{tpu_custom_call.1} parent=11 // pred_check_branch
          %414 = sbr.rel (%p412) target = $region32
        $region31: #{tpu_custom_call.1} parent=11 // pred_region
          %s416 = ssub.s32 1024, 1024
          %417 = vsyncadd [#allocation14], %s416
          %s418 = sshll.u32 [#allocation13], 4
          %s419 = int_to_ptr.vmem [resolvable:$true] %s418
          %424 = dma.hbm_to_vmem [thread:$0]  %s7, 1024, %s419, [#allocation14], 64, 64, 4
        $region32: #{tpu_custom_call.1} parent=11 // pred_fallthru
          _
        // Predicated region
        $region33: #{tpu_custom_call.1} parent=11 // pred_check
          %p425 = pneg %p253
        $region34: #{tpu_custom_call.1} parent=11 // pred_check_branch
          %427 = sbr.rel (%p425) target = $region36
        $region35: #{tpu_custom_call.1} parent=11 // pred_region
          _
        $region36: #{tpu_custom_call.1} parent=11 // pred_fallthru
          _
        // Predicated region
        $region37: #{tpu_custom_call.1} parent=11 // pred_check
          %p428 = pneg %p274
        $region38: #{tpu_custom_call.1} parent=11 // pred_check_branch
          %430 = sbr.rel (%p428) target = $region40
        $region39: #{tpu_custom_call.1} parent=11 // pred_region
          %s432 = ssub.s32 1024, 1024
          %433 = vsyncadd [#allocation14], %s432
          %s434 = sshll.u32 [#allocation15], 4
          %s435 = int_to_ptr.vmem [resolvable:$true] %s434
          %440 = dma.hbm_to_vmem [thread:$0]  %s9, 1024, %s435, [#allocation14], 64, 64, 4
        $region40: #{tpu_custom_call.1} parent=11 // pred_fallthru
          _
        // Predicated region
        $region41: #{tpu_custom_call.1} parent=11 // pred_check
          %p441 = pneg %p295
        $region42: #{tpu_custom_call.1} parent=11 // pred_check_branch
          %443 = sbr.rel (%p441) target = $region44
        $region43: #{tpu_custom_call.1} parent=11 // pred_region
          _
        $region44: #{tpu_custom_call.1} parent=11 // pred_fallthru
          _
        // Predicated region
        $region45: #{tpu_custom_call.1} parent=11 // pred_check
          %p444 = pneg %p316
        $region46: #{tpu_custom_call.1} parent=11 // pred_check_branch
          %446 = sbr.rel (%p444) target = $region48
        $region47: #{tpu_custom_call.1} parent=11 // pred_region
          _
        $region48: #{tpu_custom_call.1} parent=11 // pred_fallthru
          _
        // Predicated region
        $region49: #{tpu_custom_call.1} parent=11 // pred_check
          %p447 = pneg %p337
        $region50: #{tpu_custom_call.1} parent=11 // pred_check_branch
          %449 = sbr.rel (%p447) target = $region52
        $region51: #{tpu_custom_call.1} parent=11 // pred_region
          %s451 = ssub.s32 1024, 1024
          %452 = vsyncadd [#allocation17], %s451
          %s453 = sshll.u32 [#allocation16], 4
          %s454 = int_to_ptr.vmem [resolvable:$true] %s453
          %459 = dma.hbm_to_vmem [thread:$0]  %s12, 1024, %s454, [#allocation17], 64, 64, 4
        $region52: #{tpu_custom_call.1} parent=11 // pred_fallthru
          _
      $region12: #{tpu_custom_call.1} parent=5 // pred_fallthru
        _
      %p460 = scmp.lt.s32.totalorder %s31, 4
      // Predicated region
      $region53: #{tpu_custom_call.1} parent=5 // pred_check
        %p461 = pneg %p460
      $region54: #{tpu_custom_call.1} parent=5 // pred_check_branch
        %463 = sbr.rel (%p461) target = $region56
      $region55: #{tpu_custom_call.1} parent=5 // pred_region
        // Predicated region
        $region57: #{tpu_custom_call.1} parent=55 // pred_check
          %p464 = pneg %p65
        $region58: #{tpu_custom_call.1} parent=55 // pred_check_branch
          %466 = sbr.rel (%p464) target = $region60
        $region59: #{tpu_custom_call.1} parent=55 // pred_region
          %s467 = sand.u32 %s55, 1
          %s468 = scalar_lea.sflag [#allocation5], %s467
          %s469 = sand.u32 %s55, 1
          %s470 = smul.addr %s469, 4
          %s471 = scalar_lea.vmem [#allocation4], %s470
          %s473 = ssub.s32 64, 64
          %474 = vsyncadd %s468, %s473
          %s475 = smul.addr %s38, 2
          %s476 = sadd.s32 %s39, %s475
          %s477 = smul.addr %s476, 64
          %s478 = scalar_lea.hbm %s0, %s477
          %s480 = sshll.u32 %s471, 4
          %s481 = int_to_ptr.vmem [resolvable:$true] %s480
          %483 = dma.hbm_to_vmem [thread:$0]  %s478, 64, %s481, %s468
        $region60: #{tpu_custom_call.1} parent=55 // pred_fallthru
          _
        // Predicated region
        $region61: #{tpu_custom_call.1} parent=55 // pred_check
          %p484 = pneg %p93
        $region62: #{tpu_custom_call.1} parent=55 // pred_check_branch
          %486 = sbr.rel (%p484) target = $region64
        $region63: #{tpu_custom_call.1} parent=55 // pred_region
          %s487 = sand.u32 %s31, 1
          %s488 = scalar_lea.sflag [#allocation8], %s487
          %s489 = sand.u32 %s83, 1
          %s490 = smul.addr %s489, 4
          %s491 = scalar_lea.vmem [#allocation7], %s490
          %s493 = ssub.s32 64, 64
          %494 = vsyncadd %s488, %s493
          %s495 = smul.addr %s38, 2
          %s496 = sadd.s32 %s39, %s495
          %s497 = smul.addr %s496, 64
          %s498 = scalar_lea.hbm %s1, %s497
          %s500 = sshll.u32 %s491, 4
          %s501 = int_to_ptr.vmem [resolvable:$true] %s500
          %503 = dma.hbm_to_vmem [thread:$0]  %s498, 64, %s501, %s488
        $region64: #{tpu_custom_call.1} parent=55 // pred_fallthru
          _
        // Predicated region
        $region65: #{tpu_custom_call.1} parent=55 // pred_check
          %p504 = pneg %p121
        $region66: #{tpu_custom_call.1} parent=55 // pred_check_branch
          %506 = sbr.rel (%p504) target = $region68
        $region67: #{tpu_custom_call.1} parent=55 // pred_region
          %s507 = sand.u32 %s31, 1
          %s508 = scalar_lea.sflag [#allocation8], %s507
          %s509 = sand.u32 %s111, 1
          %s510 = smul.addr %s509, 4
          %s511 = scalar_lea.vmem [#allocation9], %s510
          %s513 = ssub.s32 64, 64
          %514 = vsyncadd %s508, %s513
          %s515 = smul.addr %s38, 2
          %s516 = sadd.s32 %s39, %s515
          %s517 = smul.addr %s516, 64
          %s518 = scalar_lea.hbm %s2, %s517
          %s520 = sshll.u32 %s511, 4
          %s521 = int_to_ptr.vmem [resolvable:$true] %s520
          %523 = dma.hbm_to_vmem [thread:$0]  %s518, 64, %s521, %s508
        $region68: #{tpu_custom_call.1} parent=55 // pred_fallthru
          _
      $region56: #{tpu_custom_call.1} parent=5 // pred_fallthru
        _
      %p524 = scmp.le.s32.totalorder 1, %s31
      %p525 = scmp.lt.s32.totalorder %s31, 5
      %p526 = pnand %p524, %p525
      %p527 = pneg %p526
      // Predicated region
      $region69: #{tpu_custom_call.1} parent=5 // pred_check
        _
      $region70: #{tpu_custom_call.1} parent=5 // pred_check_branch
        %529 = sbr.rel (%p526) target = $region72
      $region71: #{tpu_custom_call.1} parent=5 // pred_region
        %s530 = ssub.s32 %s31, 1
        %s531 = sand.u32 %s58, 1
        %s532 = scalar_lea.sflag [#allocation5], %s531
        %s533 = sand.u32 %s58, 1
        %s534 = smul.addr %s533, 4
        %s535 = scalar_lea.vmem [#allocation4], %s534
        // Predicated region
        $region73: #{tpu_custom_call.1} parent=71 // pred_check
          %p536 = pneg %p71
        $region74: #{tpu_custom_call.1} parent=71 // pred_check_branch
          %538 = sbr.rel (%p536) target = $region76
        $region75: #{tpu_custom_call.1} parent=71 // pred_region
          %539 = dma.done %s532, 64
        $region76: #{tpu_custom_call.1} parent=71 // pred_fallthru
          _
        %s540 = sand.u32 %s36, 1
        %s541 = scalar_lea.sflag [#allocation8], %s540
        %s542 = sand.u32 %s86, 1
        %s543 = smul.addr %s542, 4
        %s544 = scalar_lea.vmem [#allocation7], %s543
        // Predicated region
        $region77: #{tpu_custom_call.1} parent=71 // pred_check
          %p545 = pneg %p99
        $region78: #{tpu_custom_call.1} parent=71 // pred_check_branch
          %547 = sbr.rel (%p545) target = $region80
        $region79: #{tpu_custom_call.1} parent=71 // pred_region
          %548 = dma.done %s541, 64
        $region80: #{tpu_custom_call.1} parent=71 // pred_fallthru
          _
        %s549 = sand.u32 %s36, 1
        %s550 = scalar_lea.sflag [#allocation8], %s549
        %s551 = sand.u32 %s114, 1
        %s552 = smul.addr %s551, 4
        %s553 = scalar_lea.vmem [#allocation9], %s552
        // Predicated region
        $region81: #{tpu_custom_call.1} parent=71 // pred_check
          %p554 = pneg %p127
        $region82: #{tpu_custom_call.1} parent=71 // pred_check_branch
          %556 = sbr.rel (%p554) target = $region84
        $region83: #{tpu_custom_call.1} parent=71 // pred_region
          %557 = dma.done %s550, 64
        $region84: #{tpu_custom_call.1} parent=71 // pred_fallthru
          _
        // Predicated region
        $region85: #{tpu_custom_call.1} parent=71 // pred_check
          %p558 = pneg %p148
        $region86: #{tpu_custom_call.1} parent=71 // pred_check_branch
          %560 = sbr.rel (%p558) target = $region88
        $region87: #{tpu_custom_call.1} parent=71 // pred_region
          %561 = dma.done [#allocation11], 1024
        $region88: #{tpu_custom_call.1} parent=71 // pred_fallthru
          _
        // Predicated region
        $region89: #{tpu_custom_call.1} parent=71 // pred_check
          %p562 = pneg %p190
        $region90: #{tpu_custom_call.1} parent=71 // pred_check_branch
          %564 = sbr.rel (%p562) target = $region92
        $region91: #{tpu_custom_call.1} parent=71 // pred_region
          %565 = dma.done [#allocation11], 1024
        $region92: #{tpu_custom_call.1} parent=71 // pred_fallthru
          _
        // Predicated region
        $region93: #{tpu_custom_call.1} parent=71 // pred_check
          %p566 = pneg %p232
        $region94: #{tpu_custom_call.1} parent=71 // pred_check_branch
          %568 = sbr.rel (%p566) target = $region96
        $region95: #{tpu_custom_call.1} parent=71 // pred_region
          %569 = dma.done [#allocation14], 1024
        $region96: #{tpu_custom_call.1} parent=71 // pred_fallthru
          _
        // Predicated region
        $region97: #{tpu_custom_call.1} parent=71 // pred_check
          %p570 = pneg %p274
        $region98: #{tpu_custom_call.1} parent=71 // pred_check_branch
          %572 = sbr.rel (%p570) target = $region100
        $region99: #{tpu_custom_call.1} parent=71 // pred_region
          %573 = dma.done [#allocation14], 1024
        $region100: #{tpu_custom_call.1} parent=71 // pred_fallthru
          _
        // Predicated region
        $region101: #{tpu_custom_call.1} parent=71 // pred_check
          %p574 = pneg %p337
        $region102: #{tpu_custom_call.1} parent=71 // pred_check_branch
          %576 = sbr.rel (%p574) target = $region104
        $region103: #{tpu_custom_call.1} parent=71 // pred_region
          %577 = dma.done [#allocation17], 1024
        $region104: #{tpu_custom_call.1} parent=71 // pred_fallthru
          _
        %s578 = sand.u32 %s58, 1
        %s579 = scalar_lea.sflag [#allocation5], %s578
        %s580 = sand.u32 %s58, 1
        %s581 = smul.addr %s580, 4
        %s582 = scalar_lea.vmem [#allocation4], %s581
        %p583 = pneg %p71
        %p584 = pneg %p68
        %s585 = sand.u32 %s36, 1
        %s586 = scalar_lea.sflag [#allocation8], %s585
        %s587 = sand.u32 %s86, 1
        %s588 = smul.addr %s587, 4
        %s589 = scalar_lea.vmem [#allocation7], %s588
        %p590 = pneg %p99
        %p591 = pneg %p96
        %s592 = sand.u32 %s36, 1
        %s593 = scalar_lea.sflag [#allocation8], %s592
        %s594 = sand.u32 %s114, 1
        %s595 = smul.addr %s594, 4
        %s596 = scalar_lea.vmem [#allocation9], %s595
        %p597 = pneg %p127
        %p598 = pneg %p124
        %p599 = pneg %p148
        %p600 = pneg %p145
        %p601 = pneg %p169
        %p602 = pneg %p166
        %p603 = pneg %p190
        %p604 = pneg %p187
        %p605 = pneg %p211
        %p606 = pneg %p208
        %p607 = pneg %p232
        %p608 = pneg %p229
        %p609 = pneg %p253
        %p610 = pneg %p250
        %p611 = pneg %p274
        %p612 = pneg %p271
        %p613 = pneg %p295
        %p614 = pneg %p292
        %p615 = pneg %p316
        %p616 = pneg %p313
        %p617 = pneg %p337
        %p618 = pneg %p334
        %p619 = pneg %p365
        %p620 = pneg %p362
        %s621 = sand.u32 %s352, 1
        %s622 = scalar_lea.sflag [#allocation6], %s621
        %s623 = sand.u32 %s352, 1
        %s624 = smul.addr %s623, 8
        %s625 = scalar_lea.vmem [#allocation18], %s624
        %p627 = scmp.eq.s32.totalorder %s41, 0
        // Predicated region
        $region105: #{tpu_custom_call.1} parent=71 // pred_check
          %p628 = pneg %p627
        $region106: #{tpu_custom_call.1} parent=71 // pred_check_branch
          %630 = sbr.rel (%p628) target = $region108
        $region107: #{tpu_custom_call.1} parent=71 // pred_region
          %631 = vst [vmem:[#allocation2] sm:$0x1] 0.0
          %632 = vst [vmem:[#allocation3] sm:$0x1] 0.0
        $region108: #{tpu_custom_call.1} parent=71 // pred_fallthru
          _
        %v633 = vld [vmem:[%s535] sm:$0xf]
        %v634 = vld [vmem:[%s544] sm:$0xf]
        %v635 = vld [vmem:[%s553] sm:$0xf]
        %v636 = vld [vmem:[#allocation10] sm:$0xf]
        %v637 = vld [vmem:[#allocation10 + $0x4] sm:$0xf]
        %v638 = vld [vmem:[#allocation10 + $0x8] sm:$0xf]
        %v639 = vld [vmem:[#allocation10 + $0xc] sm:$0xf]
        %v640 = vld [vmem:[#allocation10 + $0x10] sm:$0xf]
        %v641 = vld [vmem:[#allocation10 + $0x14] sm:$0xf]
        %v642 = vld [vmem:[#allocation10 + $0x18] sm:$0xf]
        %v643 = vld [vmem:[#allocation10 + $0x1c] sm:$0xf]
        %v644 = vld [vmem:[#allocation10 + $0x20] sm:$0xf]
        %v645 = vld [vmem:[#allocation10 + $0x24] sm:$0xf]
        %v646 = vld [vmem:[#allocation10 + $0x28] sm:$0xf]
        %v647 = vld [vmem:[#allocation10 + $0x2c] sm:$0xf]
        %v648 = vld [vmem:[#allocation10 + $0x30] sm:$0xf]
        %v649 = vld [vmem:[#allocation10 + $0x34] sm:$0xf]
        %v650 = vld [vmem:[#allocation10 + $0x38] sm:$0xf]
        %v651 = vld [vmem:[#allocation10 + $0x3c] sm:$0xf]
        %v652 = vld [vmem:[%s4] sm:$0x1]
        %v654 = vlaneseq
        %v655 = vshrl.u32 %v654, 7
        %v656 = vsub.s32 0, %v655
        %v657 = vrot.slane %v652, %v656
        %v675 = vunpack.c.l.b16 %v636
        %v676 = vunpack.c.l.b16 %v637
        %v677 = vunpack.c.l.b16 %v638
        %v678 = vunpack.c.l.b16 %v639
        %v679 = vunpack.c.l.b16 %v640
        %v680 = vunpack.c.l.b16 %v641
        %v681 = vunpack.c.l.b16 %v642
        %v682 = vunpack.c.l.b16 %v643
        %v683 = vunpack.c.l.b16 %v644
        %v684 = vunpack.c.l.b16 %v645
        %v685 = vunpack.c.l.b16 %v646
        %v686 = vunpack.c.l.b16 %v647
        %v687 = vunpack.c.l.b16 %v648
        %v688 = vunpack.c.l.b16 %v649
        %v689 = vunpack.c.l.b16 %v650
        %v690 = vunpack.c.l.b16 %v651
        %v691 = vpack.c.b16 %v676, %v675
        %v692 = vpack.c.b16 %v678, %v677
        %v693 = vpack.c.b16 %v680, %v679
        %v694 = vpack.c.b16 %v682, %v681
        %v695 = vpack.c.b16 %v684, %v683
        %v696 = vpack.c.b16 %v686, %v685
        %v697 = vpack.c.b16 %v688, %v687
        %v698 = vpack.c.b16 %v690, %v689
        %707 = vmatprep.subr.bf16.mxu0 0
        %708 = vmatpush1.bf16.msra.mxu0 %v691
        %709 = vmatprep.subr.bf16.mxu0 0
        %710 = vmatpush1.bf16.msra.mxu0 %v692
        %711 = vmatprep.subr.bf16.mxu0 0
        %712 = vmatpush1.bf16.msra.mxu0 %v693
        %713 = vmatprep.subr.bf16.mxu0 0
        %714 = vmatpush1.bf16.msra.mxu0 %v694
        %715 = vmatprep.subr.bf16.mxu0 0
        %716 = vmatpush1.bf16.msra.mxu0 %v695
        %717 = vmatprep.subr.bf16.mxu0 0
        %718 = vmatpush1.bf16.msra.mxu0 %v696
        %719 = vmatprep.subr.bf16.mxu0 0
        %720 = vmatpush1.bf16.msra.mxu0 %v697
        %721 = vmatprep.subr.bf16.mxu0 0
        %722 = vmatpush1.bf16.msra.mxu0 %v698
        %723 = vmatprep.subr.bf16.mxu0 0
        %724 = vmatpush1.bf16.msra.mxu0 0
        %725 = vmatprep.subr.bf16.mxu0 0
        %726 = vmatpush1.bf16.msra.mxu0 0
        %727 = vmatprep.subr.bf16.mxu0 0
        %728 = vmatpush1.bf16.msra.mxu0 0
        %729 = vmatprep.subr.bf16.mxu0 0
        %730 = vmatpush1.bf16.msra.mxu0 0
        %731 = vmatprep.subr.bf16.mxu0 0
        %732 = vmatpush1.bf16.msra.mxu0 0
        %733 = vmatprep.subr.bf16.mxu0 0
        %734 = vmatpush1.bf16.msra.mxu0 0
        %735 = vmatprep.subr.bf16.mxu0 0
        %736 = vmatpush1.bf16.msra.mxu0 0
        %737 = vmatprep.subr.bf16.mxu0 0
        %738 = vmatpush1.bf16.msra.mxu0 0
        %739 = vmatprep.mubr.bf16.mxu0 0
        %740 = vmatmul.mubr.bf16.gmra.mrb[0].mxu0 %v633
        %v741 = vpop.f32.mrb[0].mxu0
        %v742 = vadd.f32 %v657, %v741
        %v743 = vpop.f32.mrb[0].mxu0
        %v744 = vpop.f32.mrb[0].mxu0
        %v745 = vpop.f32.mrb[0].mxu0
        %746 = vdwg.mxu0
        %v747 = vld [vmem:[#allocation12] sm:$0xf]
        %v748 = vld [vmem:[#allocation12 + $0x4] sm:$0xf]
        %v749 = vld [vmem:[#allocation12 + $0x8] sm:$0xf]
        %v750 = vld [vmem:[#allocation12 + $0xc] sm:$0xf]
        %v751 = vld [vmem:[#allocation12 + $0x10] sm:$0xf]
        %v752 = vld [vmem:[#allocation12 + $0x14] sm:$0xf]
        %v753 = vld [vmem:[#allocation12 + $0x18] sm:$0xf]
        %v754 = vld [vmem:[#allocation12 + $0x1c] sm:$0xf]
        %v755 = vld [vmem:[#allocation12 + $0x20] sm:$0xf]
        %v756 = vld [vmem:[#allocation12 + $0x24] sm:$0xf]
        %v757 = vld [vmem:[#allocation12 + $0x28] sm:$0xf]
        %v758 = vld [vmem:[#allocation12 + $0x2c] sm:$0xf]
        %v759 = vld [vmem:[#allocation12 + $0x30] sm:$0xf]
        %v760 = vld [vmem:[#allocation12 + $0x34] sm:$0xf]
        %v761 = vld [vmem:[#allocation12 + $0x38] sm:$0xf]
        %v762 = vld [vmem:[#allocation12 + $0x3c] sm:$0xf]
        %v763 = vld [vmem:[%s6] sm:$0x1]
        %v765 = vlaneseq
        %v766 = vshrl.u32 %v765, 7
        %v767 = vsub.s32 0, %v766
        %v768 = vrot.slane %v763, %v767
        %v786 = vunpack.c.l.b16 %v747
        %v787 = vunpack.c.l.b16 %v748
        %v788 = vunpack.c.l.b16 %v749
        %v789 = vunpack.c.l.b16 %v750
        %v790 = vunpack.c.l.b16 %v751
        %v791 = vunpack.c.l.b16 %v752
        %v792 = vunpack.c.l.b16 %v753
        %v793 = vunpack.c.l.b16 %v754
        %v794 = vunpack.c.l.b16 %v755
        %v795 = vunpack.c.l.b16 %v756
        %v796 = vunpack.c.l.b16 %v757
        %v797 = vunpack.c.l.b16 %v758
        %v798 = vunpack.c.l.b16 %v759
        %v799 = vunpack.c.l.b16 %v760
        %v800 = vunpack.c.l.b16 %v761
        %v801 = vunpack.c.l.b16 %v762
        %v802 = vpack.c.b16 %v787, %v786
        %v803 = vpack.c.b16 %v789, %v788
        %v804 = vpack.c.b16 %v791, %v790
        %v805 = vpack.c.b16 %v793, %v792
        %v806 = vpack.c.b16 %v795, %v794
        %v807 = vpack.c.b16 %v797, %v796
        %v808 = vpack.c.b16 %v799, %v798
        %v809 = vpack.c.b16 %v801, %v800
        %818 = vmatprep.subr.bf16.mxu0 0
        %819 = vmatpush1.bf16.msra.mxu0 %v802
        %820 = vmatprep.subr.bf16.mxu0 0
        %821 = vmatpush1.bf16.msra.mxu0 %v803
        %822 = vmatprep.subr.bf16.mxu0 0
        %823 = vmatpush1.bf16.msra.mxu0 %v804
        %824 = vmatprep.subr.bf16.mxu0 0
        %825 = vmatpush1.bf16.msra.mxu0 %v805
        %826 = vmatprep.subr.bf16.mxu0 0
        %827 = vmatpush1.bf16.msra.mxu0 %v806
        %828 = vmatprep.subr.bf16.mxu0 0
        %829 = vmatpush1.bf16.msra.mxu0 %v807
        %830 = vmatprep.subr.bf16.mxu0 0
        %831 = vmatpush1.bf16.msra.mxu0 %v808
        %832 = vmatprep.subr.bf16.mxu0 0
        %833 = vmatpush1.bf16.msra.mxu0 %v809
        %834 = vmatprep.subr.bf16.mxu0 0
        %835 = vmatpush1.bf16.msra.mxu0 0
        %836 = vmatprep.subr.bf16.mxu0 0
        %837 = vmatpush1.bf16.msra.mxu0 0
        %838 = vmatprep.subr.bf16.mxu0 0
        %839 = vmatpush1.bf16.msra.mxu0 0
        %840 = vmatprep.subr.bf16.mxu0 0
        %841 = vmatpush1.bf16.msra.mxu0 0
        %842 = vmatprep.subr.bf16.mxu0 0
        %843 = vmatpush1.bf16.msra.mxu0 0
        %844 = vmatprep.subr.bf16.mxu0 0
        %845 = vmatpush1.bf16.msra.mxu0 0
        %846 = vmatprep.subr.bf16.mxu0 0
        %847 = vmatpush1.bf16.msra.mxu0 0
        %848 = vmatprep.subr.bf16.mxu0 0
        %849 = vmatpush1.bf16.msra.mxu0 0
        %850 = vmatprep.mubr.bf16.mxu0 0
        %851 = vmatmul.mubr.bf16.gmra.mrb[0].mxu0 %v634
        %v852 = vpop.f32.mrb[0].mxu0
        %v853 = vadd.f32 %v768, %v852
        %v854 = vpop.f32.mrb[0].mxu0
        %v855 = vpop.f32.mrb[0].mxu0
        %v856 = vpop.f32.mrb[0].mxu0
        %857 = vdwg.mxu0
        %v858 = vld [vmem:[#allocation13] sm:$0xf]
        %v859 = vld [vmem:[#allocation13 + $0x4] sm:$0xf]
        %v860 = vld [vmem:[#allocation13 + $0x8] sm:$0xf]
        %v861 = vld [vmem:[#allocation13 + $0xc] sm:$0xf]
        %v862 = vld [vmem:[#allocation13 + $0x10] sm:$0xf]
        %v863 = vld [vmem:[#allocation13 + $0x14] sm:$0xf]
        %v864 = vld [vmem:[#allocation13 + $0x18] sm:$0xf]
        %v865 = vld [vmem:[#allocation13 + $0x1c] sm:$0xf]
        %v866 = vld [vmem:[#allocation13 + $0x20] sm:$0xf]
        %v867 = vld [vmem:[#allocation13 + $0x24] sm:$0xf]
        %v868 = vld [vmem:[#allocation13 + $0x28] sm:$0xf]
        %v869 = vld [vmem:[#allocation13 + $0x2c] sm:$0xf]
        %v870 = vld [vmem:[#allocation13 + $0x30] sm:$0xf]
        %v871 = vld [vmem:[#allocation13 + $0x34] sm:$0xf]
        %v872 = vld [vmem:[#allocation13 + $0x38] sm:$0xf]
        %v873 = vld [vmem:[#allocation13 + $0x3c] sm:$0xf]
        %v874 = vld [vmem:[%s8] sm:$0x1]
        %v876 = vlaneseq
        %v877 = vshrl.u32 %v876, 7
        %v878 = vsub.s32 0, %v877
        %v879 = vrot.slane %v874, %v878
        %v897 = vunpack.c.l.b16 %v858
        %v898 = vunpack.c.l.b16 %v859
        %v899 = vunpack.c.l.b16 %v860
        %v900 = vunpack.c.l.b16 %v861
        %v901 = vunpack.c.l.b16 %v862
        %v902 = vunpack.c.l.b16 %v863
        %v903 = vunpack.c.l.b16 %v864
        %v904 = vunpack.c.l.b16 %v865
        %v905 = vunpack.c.l.b16 %v866
        %v906 = vunpack.c.l.b16 %v867
        %v907 = vunpack.c.l.b16 %v868
        %v908 = vunpack.c.l.b16 %v869
        %v909 = vunpack.c.l.b16 %v870
        %v910 = vunpack.c.l.b16 %v871
        %v911 = vunpack.c.l.b16 %v872
        %v912 = vunpack.c.l.b16 %v873
        %v913 = vpack.c.b16 %v898, %v897
        %v914 = vpack.c.b16 %v900, %v899
        %v915 = vpack.c.b16 %v902, %v901
        %v916 = vpack.c.b16 %v904, %v903
        %v917 = vpack.c.b16 %v906, %v905
        %v918 = vpack.c.b16 %v908, %v907
        %v919 = vpack.c.b16 %v910, %v909
        %v920 = vpack.c.b16 %v912, %v911
        %929 = vmatprep.subr.bf16.mxu0 0
        %930 = vmatpush1.bf16.msra.mxu0 %v913
        %931 = vmatprep.subr.bf16.mxu0 0
        %932 = vmatpush1.bf16.msra.mxu0 %v914
        %933 = vmatprep.subr.bf16.mxu0 0
        %934 = vmatpush1.bf16.msra.mxu0 %v915
        %935 = vmatprep.subr.bf16.mxu0 0
        %936 = vmatpush1.bf16.msra.mxu0 %v916
        %937 = vmatprep.subr.bf16.mxu0 0
        %938 = vmatpush1.bf16.msra.mxu0 %v917
        %939 = vmatprep.subr.bf16.mxu0 0
        %940 = vmatpush1.bf16.msra.mxu0 %v918
        %941 = vmatprep.subr.bf16.mxu0 0
        %942 = vmatpush1.bf16.msra.mxu0 %v919
        %943 = vmatprep.subr.bf16.mxu0 0
        %944 = vmatpush1.bf16.msra.mxu0 %v920
        %945 = vmatprep.subr.bf16.mxu0 0
        %946 = vmatpush1.bf16.msra.mxu0 0
        %947 = vmatprep.subr.bf16.mxu0 0
        %948 = vmatpush1.bf16.msra.mxu0 0
        %949 = vmatprep.subr.bf16.mxu0 0
        %950 = vmatpush1.bf16.msra.mxu0 0
        %951 = vmatprep.subr.bf16.mxu0 0
        %952 = vmatpush1.bf16.msra.mxu0 0
        %953 = vmatprep.subr.bf16.mxu0 0
        %954 = vmatpush1.bf16.msra.mxu0 0
        %955 = vmatprep.subr.bf16.mxu0 0
        %956 = vmatpush1.bf16.msra.mxu0 0
        %957 = vmatprep.subr.bf16.mxu0 0
        %958 = vmatpush1.bf16.msra.mxu0 0
        %959 = vmatprep.subr.bf16.mxu0 0
        %960 = vmatpush1.bf16.msra.mxu0 0
        %961 = vmatprep.mubr.bf16.mxu0 0
        %962 = vmatmul.mubr.bf16.gmra.mrb[0].mxu0 %v635
        %v963 = vpop.f32.mrb[0].mxu0
        %v964 = vadd.f32 %v879, %v963
        %v965 = vpop.f32.mrb[0].mxu0
        %v966 = vpop.f32.mrb[0].mxu0
        %v967 = vpop.f32.mrb[0].mxu0
        %968 = vdwg.mxu0
        %vm969 = vcmp.gt.f32.partialorder %v742, 0.0
        %v970 = vadd.f32 %v742, 1.0
        %v971 = vmin.f32 %v742, 0.0
        %v972 = vmul.f32 %v971, 1.442695
        %v973 = vpow.pop %v972
        %v974 = vsel %vm969, %v970, %v973
        %vm975 = vcmp.gt.f32.partialorder %v853, 0.0
        %v976 = vadd.f32 %v853, 1.0
        %v977 = vmin.f32 %v853, 0.0
        %v978 = vmul.f32 %v977, 1.442695
        %v979 = vpow.pop %v978
        %v980 = vsel %vm975, %v976, %v979
        %v981 = vmul.f32 %v980, %v964
        %v982 = vpack.c.bf16 %v981, %v981
        %v983 = vpack.c.bf16 %v980, %v980
        %v984 = vld [vmem:[%s11] sm:$0xf]
        %v985 = vld [vmem:[#allocation2] sm:$0x1]
        %v987 = vlaneseq
        %v988 = vshrl.u32 %v987, 7
        %v989 = vsub.s32 0, %v988
        %v990 = vrot.slane %v985, %v989
        %vm992 = vcmask 64512
        %v994 = vsel %vm992, %v984, 0
        %vm996 = vcmask 1043456
        %v998 = vsel %vm996, %v982, 0
        %1000 = vmatprep.subr.bf16.mxu0 0
        %1001 = vmatpush1.bf16.msra.mxu0 %v998
        %1002 = vmatprep.subr.bf16.mxu0 0
        %1003 = vmatpush1.bf16.msra.mxu0 0
        %1004 = vmatprep.subr.bf16.mxu0 0
        %1005 = vmatpush1.bf16.msra.mxu0 0
        %1006 = vmatprep.subr.bf16.mxu0 0
        %1007 = vmatpush1.bf16.msra.mxu0 0
        %1008 = vmatprep.subr.bf16.mxu0 0
        %1009 = vmatpush1.bf16.msra.mxu0 0
        %1010 = vmatprep.subr.bf16.mxu0 0
        %1011 = vmatpush1.bf16.msra.mxu0 0
        %1012 = vmatprep.subr.bf16.mxu0 0
        %1013 = vmatpush1.bf16.msra.mxu0 0
        %1014 = vmatprep.subr.bf16.mxu0 0
        %1015 = vmatpush1.bf16.msra.mxu0 0
        %1016 = vmatprep.subr.bf16.mxu0 0
        %1017 = vmatpush1.bf16.msra.mxu0 0
        %1018 = vmatprep.subr.bf16.mxu0 0
        %1019 = vmatpush1.bf16.msra.mxu0 0
        %1020 = vmatprep.subr.bf16.mxu0 0
        %1021 = vmatpush1.bf16.msra.mxu0 0
        %1022 = vmatprep.subr.bf16.mxu0 0
        %1023 = vmatpush1.bf16.msra.mxu0 0
        %1024 = vmatprep.subr.bf16.mxu0 0
        %1025 = vmatpush1.bf16.msra.mxu0 0
        %1026 = vmatprep.subr.bf16.mxu0 0
        %1027 = vmatpush1.bf16.msra.mxu0 0
        %1028 = vmatprep.subr.bf16.mxu0 0
        %1029 = vmatpush1.bf16.msra.mxu0 0
        %1030 = vmatprep.subr.bf16.mxu0 0
        %1031 = vmatpush1.bf16.msra.mxu0 0
        %1032 = vmatprep.mubr.bf16.mxu0 0
        %1033 = vmatmul.mubr.bf16.gmra.mrb[0].mxu0 %v994
        %v1034 = vpop.f32.mrb[0].mxu0
        %v1035 = vadd.f32 %v990, %v1034
        %v1036 = vpop.f32.mrb[0].mxu0
        %v1037 = vpop.f32.mrb[0].mxu0
        %v1038 = vpop.f32.mrb[0].mxu0
        %1039 = vdwg.mxu0
        %v1040 = vld [vmem:[#allocation3] sm:$0x1]
        %v1042 = vlaneseq
        %v1043 = vshrl.u32 %v1042, 7
        %v1044 = vsub.s32 0, %v1043
        %v1045 = vrot.slane %v1040, %v1044
        %v1048 = vsel %vm996, %v983, 0
        %1050 = vmatprep.subr.bf16.mxu0 0
        %1051 = vmatpush1.bf16.msra.mxu0 %v1048
        %1052 = vmatprep.subr.bf16.mxu0 0
        %1053 = vmatpush1.bf16.msra.mxu0 0
        %1054 = vmatprep.subr.bf16.mxu0 0
        %1055 = vmatpush1.bf16.msra.mxu0 0
        %1056 = vmatprep.subr.bf16.mxu0 0
        %1057 = vmatpush1.bf16.msra.mxu0 0
        %1058 = vmatprep.subr.bf16.mxu0 0
        %1059 = vmatpush1.bf16.msra.mxu0 0
        %1060 = vmatprep.subr.bf16.mxu0 0
        %1061 = vmatpush1.bf16.msra.mxu0 0
        %1062 = vmatprep.subr.bf16.mxu0 0
        %1063 = vmatpush1.bf16.msra.mxu0 0
        %1064 = vmatprep.subr.bf16.mxu0 0
        %1065 = vmatpush1.bf16.msra.mxu0 0
        %1066 = vmatprep.subr.bf16.mxu0 0
        %1067 = vmatpush1.bf16.msra.mxu0 0
        %1068 = vmatprep.subr.bf16.mxu0 0
        %1069 = vmatpush1.bf16.msra.mxu0 0
        %1070 = vmatprep.subr.bf16.mxu0 0
        %1071 = vmatpush1.bf16.msra.mxu0 0
        %1072 = vmatprep.subr.bf16.mxu0 0
        %1073 = vmatpush1.bf16.msra.mxu0 0
        %1074 = vmatprep.subr.bf16.mxu0 0
        %1075 = vmatpush1.bf16.msra.mxu0 0
        %1076 = vmatprep.subr.bf16.mxu0 0
        %1077 = vmatpush1.bf16.msra.mxu0 0
        %1078 = vmatprep.subr.bf16.mxu0 0
        %1079 = vmatpush1.bf16.msra.mxu0 0
        %1080 = vmatprep.subr.bf16.mxu0 0
        %1081 = vmatpush1.bf16.msra.mxu0 0
        %1082 = vmatprep.mubr.bf16.mxu0 0
        %1083 = vmatmul.mubr.bf16.gmra.mrb[0].mxu0 %v994
        %v1084 = vpop.f32.mrb[0].mxu0
        %v1085 = vadd.f32 %v1045, %v1084
        %v1086 = vpop.f32.mrb[0].mxu0
        %v1087 = vpop.f32.mrb[0].mxu0
        %v1088 = vpop.f32.mrb[0].mxu0
        %1089 = vdwg.mxu0
        %1090 = vst [vmem:[#allocation2 - $0x7] sm:$0x80] %v1035
        %1091 = vst [vmem:[#allocation3 - $0x7] sm:$0x80] %v1085
        %v1092 = vmul.f32 %v974, %v1035
        %v1093 = vmul.f32 %v974, %v1085
        %v1094 = vpack.c.bf16 %v1093, %v1093
        %v1095 = vld [vmem:[#allocation16] sm:$0xf]
        %v1096 = vld [vmem:[#allocation16 + $0x4] sm:$0xf]
        %v1097 = vld [vmem:[#allocation16 + $0x8] sm:$0xf]
        %v1098 = vld [vmem:[#allocation16 + $0xc] sm:$0xf]
        %v1099 = vld [vmem:[#allocation16 + $0x10] sm:$0xf]
        %v1100 = vld [vmem:[#allocation16 + $0x14] sm:$0xf]
        %v1101 = vld [vmem:[#allocation16 + $0x18] sm:$0xf]
        %v1102 = vld [vmem:[#allocation16 + $0x1c] sm:$0xf]
        %v1103 = vld [vmem:[#allocation16 + $0x20] sm:$0xf]
        %v1104 = vld [vmem:[#allocation16 + $0x24] sm:$0xf]
        %v1105 = vld [vmem:[#allocation16 + $0x28] sm:$0xf]
        %v1106 = vld [vmem:[#allocation16 + $0x2c] sm:$0xf]
        %v1107 = vld [vmem:[#allocation16 + $0x30] sm:$0xf]
        %v1108 = vld [vmem:[#allocation16 + $0x34] sm:$0xf]
        %v1109 = vld [vmem:[#allocation16 + $0x38] sm:$0xf]
        %v1110 = vld [vmem:[#allocation16 + $0x3c] sm:$0xf]
        %v1127 = vunpack.c.l.b16 %v1095
        %v1128 = vunpack.c.l.b16 %v1096
        %v1129 = vunpack.c.l.b16 %v1097
        %v1130 = vunpack.c.l.b16 %v1098
        %v1131 = vunpack.c.l.b16 %v1099
        %v1132 = vunpack.c.l.b16 %v1100
        %v1133 = vunpack.c.l.b16 %v1101
        %v1134 = vunpack.c.l.b16 %v1102
        %v1135 = vunpack.c.l.b16 %v1103
        %v1136 = vunpack.c.l.b16 %v1104
        %v1137 = vunpack.c.l.b16 %v1105
        %v1138 = vunpack.c.l.b16 %v1106
        %v1139 = vunpack.c.l.b16 %v1107
        %v1140 = vunpack.c.l.b16 %v1108
        %v1141 = vunpack.c.l.b16 %v1109
        %v1142 = vunpack.c.l.b16 %v1110
        %v1143 = vpack.c.b16 %v1128, %v1127
        %v1144 = vpack.c.b16 %v1130, %v1129
        %v1145 = vpack.c.b16 %v1132, %v1131
        %v1146 = vpack.c.b16 %v1134, %v1133
        %v1147 = vpack.c.b16 %v1136, %v1135
        %v1148 = vpack.c.b16 %v1138, %v1137
        %v1149 = vpack.c.b16 %v1140, %v1139
        %v1150 = vpack.c.b16 %v1142, %v1141
        %1159 = vmatprep.subr.bf16.mxu0 0
        %1160 = vmatpush1.bf16.msra.mxu0 %v1143
        %1161 = vmatprep.subr.bf16.mxu0 0
        %1162 = vmatpush1.bf16.msra.mxu0 %v1144
        %1163 = vmatprep.subr.bf16.mxu0 0
        %1164 = vmatpush1.bf16.msra.mxu0 %v1145
        %1165 = vmatprep.subr.bf16.mxu0 0
        %1166 = vmatpush1.bf16.msra.mxu0 %v1146
        %1167 = vmatprep.subr.bf16.mxu0 0
        %1168 = vmatpush1.bf16.msra.mxu0 %v1147
        %1169 = vmatprep.subr.bf16.mxu0 0
        %1170 = vmatpush1.bf16.msra.mxu0 %v1148
        %1171 = vmatprep.subr.bf16.mxu0 0
        %1172 = vmatpush1.bf16.msra.mxu0 %v1149
        %1173 = vmatprep.subr.bf16.mxu0 0
        %1174 = vmatpush1.bf16.msra.mxu0 %v1150
        %1175 = vmatprep.subr.bf16.mxu0 0
        %1176 = vmatpush1.bf16.msra.mxu0 0
        %1177 = vmatprep.subr.bf16.mxu0 0
        %1178 = vmatpush1.bf16.msra.mxu0 0
        %1179 = vmatprep.subr.bf16.mxu0 0
        %1180 = vmatpush1.bf16.msra.mxu0 0
        %1181 = vmatprep.subr.bf16.mxu0 0
        %1182 = vmatpush1.bf16.msra.mxu0 0
        %1183 = vmatprep.subr.bf16.mxu0 0
        %1184 = vmatpush1.bf16.msra.mxu0 0
        %1185 = vmatprep.subr.bf16.mxu0 0
        %1186 = vmatpush1.bf16.msra.mxu0 0
        %1187 = vmatprep.subr.bf16.mxu0 0
        %1188 = vmatpush1.bf16.msra.mxu0 0
        %1189 = vmatprep.subr.bf16.mxu0 0
        %1190 = vmatpush1.bf16.msra.mxu0 0
        %1191 = vmatprep.mubr.bf16.mxu0 0
        %1192 = vmatmul.mubr.bf16.gmra.mrb[0].mxu0 %v1094
        %v1193 = vpop.f32.mrb[0].mxu0
        %v1194 = vadd.f32 1e-06, %v1193
        %v1195 = vpop.f32.mrb[0].mxu0
        %v1196 = vpop.f32.mrb[0].mxu0
        %v1197 = vpop.f32.mrb[0].mxu0
        %1198 = vdwg.mxu0
        %v1199 = vrcp.pop %v1194
        %v1200 = vmul.f32 %v1092, %v1199
        %v1201 = vpack.c.bf16 %v1200, %v1200
        %v1202 = vld [vmem:[#allocation15] sm:$0xf]
        %v1203 = vld [vmem:[#allocation15 + $0x4] sm:$0xf]
        %v1204 = vld [vmem:[#allocation15 + $0x8] sm:$0xf]
        %v1205 = vld [vmem:[#allocation15 + $0xc] sm:$0xf]
        %v1206 = vld [vmem:[#allocation15 + $0x10] sm:$0xf]
        %v1207 = vld [vmem:[#allocation15 + $0x14] sm:$0xf]
        %v1208 = vld [vmem:[#allocation15 + $0x18] sm:$0xf]
        %v1209 = vld [vmem:[#allocation15 + $0x1c] sm:$0xf]
        %v1210 = vld [vmem:[#allocation15 + $0x20] sm:$0xf]
        %v1211 = vld [vmem:[#allocation15 + $0x24] sm:$0xf]
        %v1212 = vld [vmem:[#allocation15 + $0x28] sm:$0xf]
        %v1213 = vld [vmem:[#allocation15 + $0x2c] sm:$0xf]
        %v1214 = vld [vmem:[#allocation15 + $0x30] sm:$0xf]
        %v1215 = vld [vmem:[#allocation15 + $0x34] sm:$0xf]
        %v1216 = vld [vmem:[#allocation15 + $0x38] sm:$0xf]
        %v1217 = vld [vmem:[#allocation15 + $0x3c] sm:$0xf]
        %v1218 = vld [vmem:[%s10] sm:$0x1]
        %v1220 = vlaneseq
        %v1221 = vshrl.u32 %v1220, 7
        %v1222 = vsub.s32 0, %v1221
        %v1223 = vrot.slane %v1218, %v1222
        %v1241 = vunpack.c.l.b16 %v1202
        %v1242 = vunpack.c.l.b16 %v1203
        %v1243 = vunpack.c.l.b16 %v1204
        %v1244 = vunpack.c.l.b16 %v1205
        %v1245 = vunpack.c.l.b16 %v1206
        %v1246 = vunpack.c.l.b16 %v1207
        %v1247 = vunpack.c.l.b16 %v1208
        %v1248 = vunpack.c.l.b16 %v1209
        %v1249 = vunpack.c.l.b16 %v1210
        %v1250 = vunpack.c.l.b16 %v1211
        %v1251 = vunpack.c.l.b16 %v1212
        %v1252 = vunpack.c.l.b16 %v1213
        %v1253 = vunpack.c.l.b16 %v1214
        %v1254 = vunpack.c.l.b16 %v1215
        %v1255 = vunpack.c.l.b16 %v1216
        %v1256 = vunpack.c.l.b16 %v1217
        %v1257 = vpack.c.b16 %v1242, %v1241
        %v1258 = vpack.c.b16 %v1244, %v1243
        %v1259 = vpack.c.b16 %v1246, %v1245
        %v1260 = vpack.c.b16 %v1248, %v1247
        %v1261 = vpack.c.b16 %v1250, %v1249
        %v1262 = vpack.c.b16 %v1252, %v1251
        %v1263 = vpack.c.b16 %v1254, %v1253
        %v1264 = vpack.c.b16 %v1256, %v1255
        %1273 = vmatprep.subr.bf16.mxu0 0
        %1274 = vmatpush1.bf16.msra.mxu0 %v1257
        %1275 = vmatprep.subr.bf16.mxu0 0
        %1276 = vmatpush1.bf16.msra.mxu0 %v1258
        %1277 = vmatprep.subr.bf16.mxu0 0
        %1278 = vmatpush1.bf16.msra.mxu0 %v1259
        %1279 = vmatprep.subr.bf16.mxu0 0
        %1280 = vmatpush1.bf16.msra.mxu0 %v1260
        %1281 = vmatprep.subr.bf16.mxu0 0
        %1282 = vmatpush1.bf16.msra.mxu0 %v1261
        %1283 = vmatprep.subr.bf16.mxu0 0
        %1284 = vmatpush1.bf16.msra.mxu0 %v1262
        %1285 = vmatprep.subr.bf16.mxu0 0
        %1286 = vmatpush1.bf16.msra.mxu0 %v1263
        %1287 = vmatprep.subr.bf16.mxu0 0
        %1288 = vmatpush1.bf16.msra.mxu0 %v1264
        %1289 = vmatprep.subr.bf16.mxu0 0
        %1290 = vmatpush1.bf16.msra.mxu0 0
        %1291 = vmatprep.subr.bf16.mxu0 0
        %1292 = vmatpush1.bf16.msra.mxu0 0
        %1293 = vmatprep.subr.bf16.mxu0 0
        %1294 = vmatpush1.bf16.msra.mxu0 0
        %1295 = vmatprep.subr.bf16.mxu0 0
        %1296 = vmatpush1.bf16.msra.mxu0 0
        %1297 = vmatprep.subr.bf16.mxu0 0
        %1298 = vmatpush1.bf16.msra.mxu0 0
        %1299 = vmatprep.subr.bf16.mxu0 0
        %1300 = vmatpush1.bf16.msra.mxu0 0
        %1301 = vmatprep.subr.bf16.mxu0 0
        %1302 = vmatpush1.bf16.msra.mxu0 0
        %1303 = vmatprep.subr.bf16.mxu0 0
        %1304 = vmatpush1.bf16.msra.mxu0 0
        %1305 = vmatprep.mubr.bf16.mxu0 0
        %1306 = vmatmul.mubr.bf16.gmra.mrb[0].mxu0 %v1201
        %v1307 = vpop.f32.mrb[0].mxu0
        %v1308 = vadd.f32 %v1223, %v1307
        %v1309 = vpop.f32.mrb[0].mxu0
        %v1310 = vpop.f32.mrb[0].mxu0
        %v1311 = vpop.f32.mrb[0].mxu0
        %1312 = vdwg.mxu0
        %1313 = vst [vmem:[%s625] sm:$0xff] %v1308
        %s1314 = sand.u32 %s352, 1
        %s1315 = scalar_lea.sflag [#allocation6], %s1314
        %s1316 = sand.u32 %s352, 1
        %s1317 = smul.addr %s1316, 8
        %s1318 = scalar_lea.vmem [#allocation18], %s1317
        // Predicated region
        $region109: #{tpu_custom_call.1} parent=71 // pred_check
          %p1319 = pneg %p362
        $region110: #{tpu_custom_call.1} parent=71 // pred_check_branch
          %1321 = sbr.rel (%p1319) target = $region112
        $region111: #{tpu_custom_call.1} parent=71 // pred_region
          %s1323 = ssub.s32 128, 128
          %1324 = vsyncadd %s1315, %s1323
          %s1325 = smul.addr %s40, 2
          %s1326 = sadd.s32 %s41, %s1325
          %s1327 = smul.addr %s1326, 128
          %s1328 = scalar_lea.hbm %s13, %s1327
          %s1330 = sshll.u32 %s1318, 4
          %s1331 = int_to_ptr.vmem [resolvable:$true] %s1330
          %1333 = dma.vmem_to_hbm [thread:$0]  %s1331, 128, %s1328, %s1315
        $region112: #{tpu_custom_call.1} parent=71 // pred_fallthru
          _
      $region72: #{tpu_custom_call.1} parent=5 // pred_fallthru
        _
      %p1334 = scmp.le.s32.totalorder 2, %s31
      // Predicated region
      $region113: #{tpu_custom_call.1} parent=5 // pred_check
        %p1335 = pneg %p1334
      $region114: #{tpu_custom_call.1} parent=5 // pred_check_branch
        %1337 = sbr.rel (%p1335) target = $region116
      $region115: #{tpu_custom_call.1} parent=5 // pred_region
        %s1338 = ssub.s32 %s31, 2
        // Predicated region
        $region117: #{tpu_custom_call.1} parent=115 // pred_check
          %p1339 = pneg %p368
        $region118: #{tpu_custom_call.1} parent=115 // pred_check_branch
          %1341 = sbr.rel (%p1339) target = $region120
        $region119: #{tpu_custom_call.1} parent=115 // pred_region
          %s1342 = sand.u32 %s353, 1
          %s1343 = scalar_lea.sflag [#allocation6], %s1342
          %s1344 = sand.u32 %s353, 1
          %s1345 = smul.addr %s1344, 8
          %s1346 = scalar_lea.vmem [#allocation18], %s1345
          %1347 = dma.done %s1343, 128
        $region120: #{tpu_custom_call.1} parent=115 // pred_fallthru
          _
      $region116: #{tpu_custom_call.1} parent=5 // pred_fallthru
        _
    $region6: #{tpu_custom_call.1} parent=1 // loop_footer
      %s35 = sadd.s32 1, %s31
    $region7: #{tpu_custom_call.1} parent=1 // loop_footer_branch
      %30 = sbr.rel target = $region3
    $region8: #{tpu_custom_call.1} parent=1 // loop_exit
      _
    %1348 = vsyncpa [#allocation5], 1
    %s1349 = scalar_lea.sflag [#allocation5], 1
    %1350 = vsyncpa %s1349, 1
    %1351 = vsyncpa [#allocation8], 1
    %s1352 = scalar_lea.sflag [#allocation8], 1
    %1353 = vsyncpa %s1352, 1
    %1354 = vsyncpa [#allocation11], 1
    %1355 = vsyncpa [#allocation14], 1
    %1356 = vsyncpa [#allocation17], 1
    %1357 = vsyncpa [#allocation6], 1
    %s1358 = scalar_lea.sflag [#allocation6], 1
    %1359 = vsyncpa %s1358, 1

</llo_original>
